<compile_context>
chip_gen: v7x
topology: tpu7x:2x2x1
jax: 0.10.0
libtpu: 0.0.40
codegen_flags: <defaults>
</compile_context>

<pallas_src>
import jax
import jax.numpy as jnp
from jax import lax
from jax.experimental import pallas as pl
from jax.experimental.pallas import tpu as pltpu

_VMEM = pl.BlockSpec(memory_space=pltpu.MemorySpace.VMEM)


# ----------------------------------------------------------------------------
# Fused kernel: all LSTM layers + fc head in one pallas_call
# ----------------------------------------------------------------------------
def _make_fused_decoder_kernel(num_layers, T, Bp, H, O_pad):
    """Builds the fused decoder kernel (closure over static shapes)."""

    def kernel(*refs):
        it = iter(refs)
        x_ref = next(it)                      # (T*Bp, F)   bf16, time-major
        h0_ref = next(it)                     # (L, Bp, H)  f32
        c0_ref = next(it)                     # (L, Bp, H)  f32
        layer_w = [(next(it), next(it), next(it)) for _ in range(num_layers)]
        fcw_ref = next(it)                    # (H, O_pad)  bf16
        fcb_ref = next(it)                    # (1, O_pad)  f32
        pred_ref = next(it)                   # (T*Bp, O_pad) f32 output
        hn_ref = next(it)                     # (L, Bp, H)    f32 output
        cn_ref = next(it)                     # (L, Bp, H)    f32 output
        seq_ref = next(it)                    # VMEM scratch (T*Bp, H) f32

        for l in range(num_layers):
            wih_ref, whh_ref, b_ref = layer_w[l]
            whh = whh_ref[...]                # (H, 4H) bf16, tiny — hold in vregs

            # ---- cuDNN split: whole-sequence input projection as ONE bf16 MXU
            #      matmul with f32 accumulation; bias folded in once.  The
            #      result stays vreg-resident (no VMEM round-trip). ----
            if l == 0:
                inp = x_ref[...]                              # already bf16
            else:
                inp = seq_ref[...].astype(jnp.bfloat16)
            gx = jnp.dot(inp, wih_ref[...],
                         preferred_element_type=jnp.float32) + b_ref[...]

            # ---- recurrence: only h @ W_hh on the serial critical path.
            #      Fully unrolled (static T), static sublane-aligned offsets. ----
            h = h0_ref[l]                                     # (Bp, H) f32
            c = c0_ref[l]
            for t in range(T):
                gates = gx[t * Bp:(t + 1) * Bp, :] + jnp.dot(
                    h.astype(jnp.bfloat16), whh,
                    preferred_element_type=jnp.float32)       # (Bp, 4H) f32
                # gate columns pre-permuted to (i, f, o, g):
                #   sigmoid on lanes [0:3H], tanh only on [3H:4H]
                sig = jax.nn.sigmoid(gates[:, 0:3 * H])
                i_g = sig[:, 0:H]
                f_g = sig[:, H:2 * H]
                o_g = sig[:, 2 * H:3 * H]
                g_g = jnp.tanh(gates[:, 3 * H:4 * H])
                c = f_g * c + i_g * g_g
                h = o_g * jnp.tanh(c)
                seq_ref[pl.ds(t * Bp, Bp), :] = h             # static, aligned
            hn_ref[l] = h
            cn_ref[l] = c

        # ---- fc head: ONE lane-dense matmul over the whole last-layer
        #      sequence, full-width (O padded to 128) store ----
        pred_ref[...] = jnp.dot(seq_ref[...].astype(jnp.bfloat16), fcw_ref[...],
                                preferred_element_type=jnp.float32) + fcb_ref[...]

    return kernel


# ----------------------------------------------------------------------------
# Parameter init (PyTorch-shaped, uniform(-k, k), gate order i,f,g,o)
# ----------------------------------------------------------------------------
def init_lstm_decoder_params(key, n_features, hidden_size, num_layers,
                             output_size):
    params = {"layers": [], "fc": None}
    k = 1.0 / jnp.sqrt(hidden_size)
    for l in range(num_layers):
        in_size = n_features if l == 0 else hidden_size
        key, k1, k2, k3, k4 = jax.random.split(key, 5)
        params["layers"].append({
            "w_ih": jax.random.uniform(k1, (4 * hidden_size, in_size),
                                       jnp.float32, -k, k),
            "w_hh": jax.random.uniform(k2, (4 * hidden_size, hidden_size),
                                       jnp.float32, -k, k),
            "b_ih": jax.random.uniform(k3, (4 * hidden_size,), jnp.float32, -k, k),
            "b_hh": jax.random.uniform(k4, (4 * hidden_size,), jnp.float32, -k, k),
        })
    key, k1, k2 = jax.random.split(key, 3)
    params["fc"] = {
        "w": jax.random.uniform(k1, (output_size, hidden_size), jnp.float32, -k, k),
        "b": jax.random.uniform(k2, (output_size,), jnp.float32, -k, k),
    }
    return params


# ----------------------------------------------------------------------------
# Module wrapper
# ----------------------------------------------------------------------------
@jax.jit
def lstm_decoder_forward(x, h0, c0, params):
    """x: (B, T, F) batch_first; h0/c0: (L, B, H). Matches PyTorch LSTMDecoder."""
    B, T, F = x.shape
    L, _, H = h0.shape
    O = params["fc"]["w"].shape[0]
    O_pad = ((O + 127) // 128) * 128          # lane-dense fc output in-kernel
    Bp = ((B + 7) // 8) * 8                   # sublane-aligned batch

    def perm(w):
        # PyTorch gate row order (i, f, g, o)  ->  kernel order (i, f, o, g)
        return jnp.concatenate(
            [w[0:H], w[H:2 * H], w[3 * H:4 * H], w[2 * H:3 * H]], axis=0)

    flat_weights = []
    for p in params["layers"]:
        wih_t = perm(p["w_ih"]).T.astype(jnp.bfloat16)        # (in, 4H) bf16
        whh_t = perm(p["w_hh"]).T.astype(jnp.bfloat16)        # (H, 4H)  bf16
        b = perm(p["b_ih"] + p["b_hh"]).reshape(1, -1)        # (1, 4H)  f32
        flat_weights += [wih_t, whh_t, b]

    fcw = jnp.pad(params["fc"]["w"].T,
                  ((0, 0), (0, O_pad - O))).astype(jnp.bfloat16)
    fcb = jnp.pad(params["fc"]["b"].reshape(1, -1), ((0, 0), (0, O_pad - O)))

    # time-major, batch padded to 8 sublanes, flattened once outside the kernel
    x_tm = jnp.transpose(x, (1, 0, 2))                        # (T, B, F)
    x_tm = jnp.pad(x_tm, ((0, 0), (0, Bp - B), (0, 0)))       # (T, Bp, F)
    x2d = x_tm.reshape(T * Bp, F).astype(jnp.bfloat16)
    h0p = jnp.pad(h0, ((0, 0), (0, Bp - B), (0, 0)))
    c0p = jnp.pad(c0, ((0, 0), (0, Bp - B), (0, 0)))

    kernel = _make_fused_decoder_kernel(L, T, Bp, H, O_pad)
    n_inputs = 3 + 3 * L + 2
    out_shapes = (
        jax.ShapeDtypeStruct((T * Bp, O_pad), jnp.float32),   # padded pred
        jax.ShapeDtypeStruct((L, Bp, H), jnp.float32),        # h_N (padded B)
        jax.ShapeDtypeStruct((L, Bp, H), jnp.float32),        # c_N (padded B)
    )
    pred2d, h_n, c_n = pl.pallas_call(
        kernel,
        out_shape=out_shapes,
        in_specs=[_VMEM] * n_inputs,
        out_specs=(_VMEM, _VMEM, _VMEM),
        scratch_shapes=[
            pltpu.VMEM((T * Bp, H), jnp.float32),      # inter-layer sequence
        ],
    )(x2d, h0p, c0p, *flat_weights, fcw, fcb)

    prediction = pred2d.reshape(T, Bp, O_pad)[:, :B, :O].transpose(1, 0, 2)
    return prediction, (h_n[:, :B, :], c_n[:, :B, :])


# ----------------------------------------------------------------------------
# Pure-JAX f32 reference (PyTorch semantics, standard i,f,g,o gate order)
# ----------------------------------------------------------------------------
def _reference_forward(x, h0, c0, params):
    B, T, _ = x.shape
    H = h0.shape[-1]
    layer_in = x
    hs, cs = [], []
    for l, p in enumerate(params["layers"]):
        wih_t = p["w_ih"].T
        whh_t = p["w_hh"].T
        b = (p["b_ih"] + p["b_hh"]).reshape(1, -1)

        def cell_fn(carry, x_t, wih_t=wih_t, whh_t=whh_t, b=b):
            h, c = carry
            gates = x_t @ wih_t + h @ whh_t + b
            i = jax.nn.sigmoid(gates[:, 0:H])
            f = jax.nn.sigmoid(gates[:, H:2 * H])
            g = jnp.tanh(gates[:, 2 * H:3 * H])
            o = jax.nn.sigmoid(gates[:, 3 * H:4 * H])
            c_new = f * c + i * g
            h_new = o * jnp.tanh(c_new)
            return (h_new, c_new), h_new

        (h_n, c_n), seq = lax.scan(cell_fn, (h0[l], c0[l]),
                                   jnp.transpose(layer_in, (1, 0, 2)))
        layer_in = jnp.transpose(seq, (1, 0, 2))
        hs.append(h_n)
        cs.append(c_n)
    pred = layer_in @ params["fc"]["w"].T + params["fc"]["b"]
    return pred, (jnp.stack(hs), jnp.stack(cs))


# ----------------------------------------------------------------------------
if __name__ == "__main__":
    n_features, hidden_size, num_layers, output_size = 4, 32, 2, 4
    B, T = 2, 8

    key = jax.random.PRNGKey(0)
    key, kx, kh, kc = jax.random.split(key, 4)
    params = init_lstm_decoder_params(key, n_features, hidden_size,
                                      num_layers, output_size)

    x = jax.random.normal(kx, (B, T, n_features), jnp.float32)
    h0 = jax.random.normal(kh, (num_layers, B, hidden_size), jnp.float32)
    c0 = jax.random.normal(kc, (num_layers, B, hidden_size), jnp.float32)

    pred, (h_n, c_n) = lstm_decoder_forward(x, h0, c0, params)
    jax.block_until_ready((pred, h_n, c_n))

    # sanity vs pure-f32 reference; tolerance relaxed for bf16 MXU operands
    pred_ref, (h_ref, c_ref) = _reference_forward(x, h0, c0, params)
    assert pred.shape == (B, T, output_size)
    assert h_n.shape == (num_layers, B, hidden_size)
    assert c_n.shape == (num_layers, B, hidden_size)
    assert jnp.allclose(pred, pred_ref, atol=5e-2, rtol=5e-2)
    assert jnp.allclose(h_n, h_ref, atol=5e-2, rtol=5e-2)
    assert jnp.allclose(c_n, c_ref, atol=5e-2, rtol=5e-2)

    print("KERNEL_OK")
</pallas_src>

<mosaic_0001>
module attributes {stable_mosaic.version = 11 : i64} {
  func.func @kernel(%arg0: memref<64x4xbf16, #tpu.memory_space<vmem>>, %arg1: memref<2x8x32xf32, #tpu.memory_space<vmem>>, %arg2: memref<2x8x32xf32, #tpu.memory_space<vmem>>, %arg3: memref<4x128xbf16, #tpu.memory_space<vmem>>, %arg4: memref<32x128xbf16, #tpu.memory_space<vmem>>, %arg5: memref<1x128xf32, #tpu.memory_space<vmem>>, %arg6: memref<32x128xbf16, #tpu.memory_space<vmem>>, %arg7: memref<32x128xbf16, #tpu.memory_space<vmem>>, %arg8: memref<1x128xf32, #tpu.memory_space<vmem>>, %arg9: memref<32x128xbf16, #tpu.memory_space<vmem>>, %arg10: memref<1x128xf32, #tpu.memory_space<vmem>>, %arg11: memref<64x128xf32, #tpu.memory_space<vmem>>, %arg12: memref<2x8x32xf32, #tpu.memory_space<vmem>>, %arg13: memref<2x8x32xf32, #tpu.memory_space<vmem>>, %arg14: memref<64x32xf32, #tpu.memory_space<vmem>>) attributes {dimension_semantics = [], scalar_prefetch = 0 : i64, scratch_operands = 1 : i64, tpu.core_type = #tpu.core_type<tc>} {
    %c0 = arith.constant 0 : index
    %c0_0 = arith.constant 0 : index
    %0 = vector.load %arg4[%c0, %c0_0] : memref<32x128xbf16, #tpu.memory_space<vmem>>, vector<32x128xbf16>
    %c0_1 = arith.constant 0 : index
    %c0_2 = arith.constant 0 : index
    %1 = vector.load %arg0[%c0_1, %c0_2] : memref<64x4xbf16, #tpu.memory_space<vmem>>, vector<64x4xbf16>
    %c0_3 = arith.constant 0 : index
    %c0_4 = arith.constant 0 : index
    %2 = vector.load %arg3[%c0_3, %c0_4] : memref<4x128xbf16, #tpu.memory_space<vmem>>, vector<4x128xbf16>
    %cst = arith.constant dense<0.000000e+00> : vector<64x128xf32>
    %3 = tpu.matmul %1, %2, %cst {dimension_numbers = #tpu.dot_dimension_numbers<[1], [0], [0], [1], [0, 0, 1, 1], [], []>} : vector<64x4xbf16>, vector<4x128xbf16>, vector<64x128xf32> -> vector<64x128xf32>
    %c0_5 = arith.constant 0 : index
    %c0_6 = arith.constant 0 : index
    %4 = vector.load %arg5[%c0_5, %c0_6] : memref<1x128xf32, #tpu.memory_space<vmem>>, vector<1x128xf32>
    %5 = vector.broadcast %4 : vector<1x128xf32> to vector<64x128xf32>
    %6 = arith.addf %3, %5 : vector<64x128xf32>
    %c0_7 = arith.constant 0 : index
    %c0_8 = arith.constant 0 : index
    %c0_9 = arith.constant 0 : index
    %7 = vector.load %arg1[%c0_7, %c0_8, %c0_9] : memref<2x8x32xf32, #tpu.memory_space<vmem>>, vector<1x8x32xf32>
    %8 = vector.shape_cast %7 : vector<1x8x32xf32> to vector<8x32xf32>
    %c0_10 = arith.constant 0 : index
    %c0_11 = arith.constant 0 : index
    %c0_12 = arith.constant 0 : index
    %9 = vector.load %arg2[%c0_10, %c0_11, %c0_12] : memref<2x8x32xf32, #tpu.memory_space<vmem>>, vector<1x8x32xf32>
    %10 = vector.shape_cast %9 : vector<1x8x32xf32> to vector<8x32xf32>
    %11 = vector.extract_strided_slice %6 {offsets = [0, 0], sizes = [8, 128], strides = [1, 1]} : vector<64x128xf32> to vector<8x128xf32>
    %12 = arith.truncf %8 : vector<8x32xf32> to vector<8x32xbf16>
    %cst_13 = arith.constant dense<0.000000e+00> : vector<8x128xf32>
    %13 = tpu.matmul %12, %0, %cst_13 {dimension_numbers = #tpu.dot_dimension_numbers<[1], [0], [0], [1], [0, 0, 1, 1], [], []>} : vector<8x32xbf16>, vector<32x128xbf16>, vector<8x128xf32> -> vector<8x128xf32>
    %14 = arith.addf %11, %13 : vector<8x128xf32>
    %15 = vector.extract_strided_slice %14 {offsets = [0, 0], sizes = [8, 96], strides = [1, 1]} : vector<8x128xf32> to vector<8x96xf32>
    %16 = arith.negf %15 : vector<8x96xf32>
    %17 = math.exp %16 : vector<8x96xf32>
    %cst_14 = arith.constant 1.000000e+00 : f32
    %18 = vector.broadcast %cst_14 : f32 to vector<8x96xf32>
    %19 = arith.addf %18, %17 : vector<8x96xf32>
    %20 = arith.divf %18, %19 : vector<8x96xf32>
    %21 = vector.extract_strided_slice %20 {offsets = [0, 0], sizes = [8, 32], strides = [1, 1]} : vector<8x96xf32> to vector<8x32xf32>
    %22 = vector.extract_strided_slice %20 {offsets = [0, 32], sizes = [8, 32], strides = [1, 1]} : vector<8x96xf32> to vector<8x32xf32>
    %23 = vector.extract_strided_slice %20 {offsets = [0, 64], sizes = [8, 32], strides = [1, 1]} : vector<8x96xf32> to vector<8x32xf32>
    %24 = vector.extract_strided_slice %14 {offsets = [0, 96], sizes = [8, 32], strides = [1, 1]} : vector<8x128xf32> to vector<8x32xf32>
    %25 = math.tanh %24 : vector<8x32xf32>
    %26 = arith.mulf %22, %10 : vector<8x32xf32>
    %27 = arith.mulf %21, %25 : vector<8x32xf32>
    %28 = arith.addf %26, %27 : vector<8x32xf32>
    %29 = math.tanh %28 : vector<8x32xf32>
    %30 = arith.mulf %23, %29 : vector<8x32xf32>
    %c0_15 = arith.constant 0 : index
    %c0_16 = arith.constant 0 : index
    %31 = vector.load %arg14[%c0_15, %c0_16] : memref<64x32xf32, #tpu.memory_space<vmem>>, vector<8x32xf32>
    tpu.vector_store %arg14[%c0_15, %c0_16], %30 {strides = array<i32>} : memref<64x32xf32, #tpu.memory_space<vmem>>, vector<8x32xf32>,
    %32 = vector.extract_strided_slice %6 {offsets = [8, 0], sizes = [8, 128], strides = [1, 1]} : vector<64x128xf32> to vector<8x128xf32>
    %33 = arith.truncf %30 : vector<8x32xf32> to vector<8x32xbf16>
    %cst_17 = arith.constant dense<0.000000e+00> : vector<8x128xf32>
    %34 = tpu.matmul %33, %0, %cst_17 {dimension_numbers = #tpu.dot_dimension_numbers<[1], [0], [0], [1], [0, 0, 1, 1], [], []>} : vector<8x32xbf16>, vector<32x128xbf16>, vector<8x128xf32> -> vector<8x128xf32>
    %35 = arith.addf %32, %34 : vector<8x128xf32>
    %36 = vector.extract_strided_slice %35 {offsets = [0, 0], sizes = [8, 96], strides = [1, 1]} : vector<8x128xf32> to vector<8x96xf32>
    %37 = arith.negf %36 : vector<8x96xf32>
    %38 = math.exp %37 : vector<8x96xf32>
    %cst_18 = arith.constant 1.000000e+00 : f32
    %39 = vector.broadcast %cst_18 : f32 to vector<8x96xf32>
    %40 = arith.addf %39, %38 : vector<8x96xf32>
    %41 = arith.divf %39, %40 : vector<8x96xf32>
    %42 = vector.extract_strided_slice %41 {offsets = [0, 0], sizes = [8, 32], strides = [1, 1]} : vector<8x96xf32> to vector<8x32xf32>
    %43 = vector.extract_strided_slice %41 {offsets = [0, 32], sizes = [8, 32], strides = [1, 1]} : vector<8x96xf32> to vector<8x32xf32>
    %44 = vector.extract_strided_slice %41 {offsets = [0, 64], sizes = [8, 32], strides = [1, 1]} : vector<8x96xf32> to vector<8x32xf32>
    %45 = vector.extract_strided_slice %35 {offsets = [0, 96], sizes = [8, 32], strides = [1, 1]} : vector<8x128xf32> to vector<8x32xf32>
    %46 = math.tanh %45 : vector<8x32xf32>
    %47 = arith.mulf %43, %28 : vector<8x32xf32>
    %48 = arith.mulf %42, %46 : vector<8x32xf32>
    %49 = arith.addf %47, %48 : vector<8x32xf32>
    %50 = math.tanh %49 : vector<8x32xf32>
    %51 = arith.mulf %44, %50 : vector<8x32xf32>
    %c8 = arith.constant 8 : index
    %c0_19 = arith.constant 0 : index
    %52 = vector.load %arg14[%c8, %c0_19] : memref<64x32xf32, #tpu.memory_space<vmem>>, vector<8x32xf32>
    tpu.vector_store %arg14[%c8, %c0_19], %51 {strides = array<i32>} : memref<64x32xf32, #tpu.memory_space<vmem>>, vector<8x32xf32>,
    %53 = vector.extract_strided_slice %6 {offsets = [16, 0], sizes = [8, 128], strides = [1, 1]} : vector<64x128xf32> to vector<8x128xf32>
    %54 = arith.truncf %51 : vector<8x32xf32> to vector<8x32xbf16>
    %cst_20 = arith.constant dense<0.000000e+00> : vector<8x128xf32>
    %55 = tpu.matmul %54, %0, %cst_20 {dimension_numbers = #tpu.dot_dimension_numbers<[1], [0], [0], [1], [0, 0, 1, 1], [], []>} : vector<8x32xbf16>, vector<32x128xbf16>, vector<8x128xf32> -> vector<8x128xf32>
    %56 = arith.addf %53, %55 : vector<8x128xf32>
    %57 = vector.extract_strided_slice %56 {offsets = [0, 0], sizes = [8, 96], strides = [1, 1]} : vector<8x128xf32> to vector<8x96xf32>
    %58 = arith.negf %57 : vector<8x96xf32>
    %59 = math.exp %58 : vector<8x96xf32>
    %cst_21 = arith.constant 1.000000e+00 : f32
    %60 = vector.broadcast %cst_21 : f32 to vector<8x96xf32>
    %61 = arith.addf %60, %59 : vector<8x96xf32>
    %62 = arith.divf %60, %61 : vector<8x96xf32>
    %63 = vector.extract_strided_slice %62 {offsets = [0, 0], sizes = [8, 32], strides = [1, 1]} : vector<8x96xf32> to vector<8x32xf32>
    %64 = vector.extract_strided_slice %62 {offsets = [0, 32], sizes = [8, 32], strides = [1, 1]} : vector<8x96xf32> to vector<8x32xf32>
    %65 = vector.extract_strided_slice %62 {offsets = [0, 64], sizes = [8, 32], strides = [1, 1]} : vector<8x96xf32> to vector<8x32xf32>
    %66 = vector.extract_strided_slice %56 {offsets = [0, 96], sizes = [8, 32], strides = [1, 1]} : vector<8x128xf32> to vector<8x32xf32>
    %67 = math.tanh %66 : vector<8x32xf32>
    %68 = arith.mulf %64, %49 : vector<8x32xf32>
    %69 = arith.mulf %63, %67 : vector<8x32xf32>
    %70 = arith.addf %68, %69 : vector<8x32xf32>
    %71 = math.tanh %70 : vector<8x32xf32>
    %72 = arith.mulf %65, %71 : vector<8x32xf32>
    %c16 = arith.constant 16 : index
    %c0_22 = arith.constant 0 : index
    %73 = vector.load %arg14[%c16, %c0_22] : memref<64x32xf32, #tpu.memory_space<vmem>>, vector<8x32xf32>
    tpu.vector_store %arg14[%c16, %c0_22], %72 {strides = array<i32>} : memref<64x32xf32, #tpu.memory_space<vmem>>, vector<8x32xf32>,
    %74 = vector.extract_strided_slice %6 {offsets = [24, 0], sizes = [8, 128], strides = [1, 1]} : vector<64x128xf32> to vector<8x128xf32>
    %75 = arith.truncf %72 : vector<8x32xf32> to vector<8x32xbf16>
    %cst_23 = arith.constant dense<0.000000e+00> : vector<8x128xf32>
    %76 = tpu.matmul %75, %0, %cst_23 {dimension_numbers = #tpu.dot_dimension_numbers<[1], [0], [0], [1], [0, 0, 1, 1], [], []>} : vector<8x32xbf16>, vector<32x128xbf16>, vector<8x128xf32> -> vector<8x128xf32>
    %77 = arith.addf %74, %76 : vector<8x128xf32>
    %78 = vector.extract_strided_slice %77 {offsets = [0, 0], sizes = [8, 96], strides = [1, 1]} : vector<8x128xf32> to vector<8x96xf32>
    %79 = arith.negf %78 : vector<8x96xf32>
    %80 = math.exp %79 : vector<8x96xf32>
    %cst_24 = arith.constant 1.000000e+00 : f32
    %81 = vector.broadcast %cst_24 : f32 to vector<8x96xf32>
    %82 = arith.addf %81, %80 : vector<8x96xf32>
    %83 = arith.divf %81, %82 : vector<8x96xf32>
    %84 = vector.extract_strided_slice %83 {offsets = [0, 0], sizes = [8, 32], strides = [1, 1]} : vector<8x96xf32> to vector<8x32xf32>
    %85 = vector.extract_strided_slice %83 {offsets = [0, 32], sizes = [8, 32], strides = [1, 1]} : vector<8x96xf32> to vector<8x32xf32>
    %86 = vector.extract_strided_slice %83 {offsets = [0, 64], sizes = [8, 32], strides = [1, 1]} : vector<8x96xf32> to vector<8x32xf32>
    %87 = vector.extract_strided_slice %77 {offsets = [0, 96], sizes = [8, 32], strides = [1, 1]} : vector<8x128xf32> to vector<8x32xf32>
    %88 = math.tanh %87 : vector<8x32xf32>
    %89 = arith.mulf %85, %70 : vector<8x32xf32>
    %90 = arith.mulf %84, %88 : vector<8x32xf32>
    %91 = arith.addf %89, %90 : vector<8x32xf32>
    %92 = math.tanh %91 : vector<8x32xf32>
    %93 = arith.mulf %86, %92 : vector<8x32xf32>
    %c24 = arith.constant 24 : index
    %c0_25 = arith.constant 0 : index
    %94 = vector.load %arg14[%c24, %c0_25] : memref<64x32xf32, #tpu.memory_space<vmem>>, vector<8x32xf32>
    tpu.vector_store %arg14[%c24, %c0_25], %93 {strides = array<i32>} : memref<64x32xf32, #tpu.memory_space<vmem>>, vector<8x32xf32>,
    %95 = vector.extract_strided_slice %6 {offsets = [32, 0], sizes = [8, 128], strides = [1, 1]} : vector<64x128xf32> to vector<8x128xf32>
    %96 = arith.truncf %93 : vector<8x32xf32> to vector<8x32xbf16>
    %cst_26 = arith.constant dense<0.000000e+00> : vector<8x128xf32>
    %97 = tpu.matmul %96, %0, %cst_26 {dimension_numbers = #tpu.dot_dimension_numbers<[1], [0], [0], [1], [0, 0, 1, 1], [], []>} : vector<8x32xbf16>, vector<32x128xbf16>, vector<8x128xf32> -> vector<8x128xf32>
    %98 = arith.addf %95, %97 : vector<8x128xf32>
    %99 = vector.extract_strided_slice %98 {offsets = [0, 0], sizes = [8, 96], strides = [1, 1]} : vector<8x128xf32> to vector<8x96xf32>
    %100 = arith.negf %99 : vector<8x96xf32>
    %101 = math.exp %100 : vector<8x96xf32>
    %cst_27 = arith.constant 1.000000e+00 : f32
    %102 = vector.broadcast %cst_27 : f32 to vector<8x96xf32>
    %103 = arith.addf %102, %101 : vector<8x96xf32>
    %104 = arith.divf %102, %103 : vector<8x96xf32>
    %105 = vector.extract_strided_slice %104 {offsets = [0, 0], sizes = [8, 32], strides = [1, 1]} : vector<8x96xf32> to vector<8x32xf32>
    %106 = vector.extract_strided_slice %104 {offsets = [0, 32], sizes = [8, 32], strides = [1, 1]} : vector<8x96xf32> to vector<8x32xf32>
    %107 = vector.extract_strided_slice %104 {offsets = [0, 64], sizes = [8, 32], strides = [1, 1]} : vector<8x96xf32> to vector<8x32xf32>
    %108 = vector.extract_strided_slice %98 {offsets = [0, 96], sizes = [8, 32], strides = [1, 1]} : vector<8x128xf32> to vector<8x32xf32>
    %109 = math.tanh %108 : vector<8x32xf32>
    %110 = arith.mulf %106, %91 : vector<8x32xf32>
    %111 = arith.mulf %105, %109 : vector<8x32xf32>
    %112 = arith.addf %110, %111 : vector<8x32xf32>
    %113 = math.tanh %112 : vector<8x32xf32>
    %114 = arith.mulf %107, %113 : vector<8x32xf32>
    %c32 = arith.constant 32 : index
    %c0_28 = arith.constant 0 : index
    %115 = vector.load %arg14[%c32, %c0_28] : memref<64x32xf32, #tpu.memory_space<vmem>>, vector<8x32xf32>
    tpu.vector_store %arg14[%c32, %c0_28], %114 {strides = array<i32>} : memref<64x32xf32, #tpu.memory_space<vmem>>, vector<8x32xf32>,
    %116 = vector.extract_strided_slice %6 {offsets = [40, 0], sizes = [8, 128], strides = [1, 1]} : vector<64x128xf32> to vector<8x128xf32>
    %117 = arith.truncf %114 : vector<8x32xf32> to vector<8x32xbf16>
    %cst_29 = arith.constant dense<0.000000e+00> : vector<8x128xf32>
    %118 = tpu.matmul %117, %0, %cst_29 {dimension_numbers = #tpu.dot_dimension_numbers<[1], [0], [0], [1], [0, 0, 1, 1], [], []>} : vector<8x32xbf16>, vector<32x128xbf16>, vector<8x128xf32> -> vector<8x128xf32>
    %119 = arith.addf %116, %118 : vector<8x128xf32>
    %120 = vector.extract_strided_slice %119 {offsets = [0, 0], sizes = [8, 96], strides = [1, 1]} : vector<8x128xf32> to vector<8x96xf32>
    %121 = arith.negf %120 : vector<8x96xf32>
    %122 = math.exp %121 : vector<8x96xf32>
    %cst_30 = arith.constant 1.000000e+00 : f32
    %123 = vector.broadcast %cst_30 : f32 to vector<8x96xf32>
    %124 = arith.addf %123, %122 : vector<8x96xf32>
    %125 = arith.divf %123, %124 : vector<8x96xf32>
    %126 = vector.extract_strided_slice %125 {offsets = [0, 0], sizes = [8, 32], strides = [1, 1]} : vector<8x96xf32> to vector<8x32xf32>
    %127 = vector.extract_strided_slice %125 {offsets = [0, 32], sizes = [8, 32], strides = [1, 1]} : vector<8x96xf32> to vector<8x32xf32>
    %128 = vector.extract_strided_slice %125 {offsets = [0, 64], sizes = [8, 32], strides = [1, 1]} : vector<8x96xf32> to vector<8x32xf32>
    %129 = vector.extract_strided_slice %119 {offsets = [0, 96], sizes = [8, 32], strides = [1, 1]} : vector<8x128xf32> to vector<8x32xf32>
    %130 = math.tanh %129 : vector<8x32xf32>
    %131 = arith.mulf %127, %112 : vector<8x32xf32>
    %132 = arith.mulf %126, %130 : vector<8x32xf32>
    %133 = arith.addf %131, %132 : vector<8x32xf32>
    %134 = math.tanh %133 : vector<8x32xf32>
    %135 = arith.mulf %128, %134 : vector<8x32xf32>
    %c40 = arith.constant 40 : index
    %c0_31 = arith.constant 0 : index
    %136 = vector.load %arg14[%c40, %c0_31] : memref<64x32xf32, #tpu.memory_space<vmem>>, vector<8x32xf32>
    tpu.vector_store %arg14[%c40, %c0_31], %135 {strides = array<i32>} : memref<64x32xf32, #tpu.memory_space<vmem>>, vector<8x32xf32>,
    %137 = vector.extract_strided_slice %6 {offsets = [48, 0], sizes = [8, 128], strides = [1, 1]} : vector<64x128xf32> to vector<8x128xf32>
    %138 = arith.truncf %135 : vector<8x32xf32> to vector<8x32xbf16>
    %cst_32 = arith.constant dense<0.000000e+00> : vector<8x128xf32>
    %139 = tpu.matmul %138, %0, %cst_32 {dimension_numbers = #tpu.dot_dimension_numbers<[1], [0], [0], [1], [0, 0, 1, 1], [], []>} : vector<8x32xbf16>, vector<32x128xbf16>, vector<8x128xf32> -> vector<8x128xf32>
    %140 = arith.addf %137, %139 : vector<8x128xf32>
    %141 = vector.extract_strided_slice %140 {offsets = [0, 0], sizes = [8, 96], strides = [1, 1]} : vector<8x128xf32> to vector<8x96xf32>
    %142 = arith.negf %141 : vector<8x96xf32>
    %143 = math.exp %142 : vector<8x96xf32>
    %cst_33 = arith.constant 1.000000e+00 : f32
    %144 = vector.broadcast %cst_33 : f32 to vector<8x96xf32>
    %145 = arith.addf %144, %143 : vector<8x96xf32>
    %146 = arith.divf %144, %145 : vector<8x96xf32>
    %147 = vector.extract_strided_slice %146 {offsets = [0, 0], sizes = [8, 32], strides = [1, 1]} : vector<8x96xf32> to vector<8x32xf32>
    %148 = vector.extract_strided_slice %146 {offsets = [0, 32], sizes = [8, 32], strides = [1, 1]} : vector<8x96xf32> to vector<8x32xf32>
    %149 = vector.extract_strided_slice %146 {offsets = [0, 64], sizes = [8, 32], strides = [1, 1]} : vector<8x96xf32> to vector<8x32xf32>
    %150 = vector.extract_strided_slice %140 {offsets = [0, 96], sizes = [8, 32], strides = [1, 1]} : vector<8x128xf32> to vector<8x32xf32>
    %151 = math.tanh %150 : vector<8x32xf32>
    %152 = arith.mulf %148, %133 : vector<8x32xf32>
    %153 = arith.mulf %147, %151 : vector<8x32xf32>
    %154 = arith.addf %152, %153 : vector<8x32xf32>
    %155 = math.tanh %154 : vector<8x32xf32>
    %156 = arith.mulf %149, %155 : vector<8x32xf32>
    %c48 = arith.constant 48 : index
    %c0_34 = arith.constant 0 : index
    %157 = vector.load %arg14[%c48, %c0_34] : memref<64x32xf32, #tpu.memory_space<vmem>>, vector<8x32xf32>
    tpu.vector_store %arg14[%c48, %c0_34], %156 {strides = array<i32>} : memref<64x32xf32, #tpu.memory_space<vmem>>, vector<8x32xf32>,
    %158 = vector.extract_strided_slice %6 {offsets = [56, 0], sizes = [8, 128], strides = [1, 1]} : vector<64x128xf32> to vector<8x128xf32>
    %159 = arith.truncf %156 : vector<8x32xf32> to vector<8x32xbf16>
    %cst_35 = arith.constant dense<0.000000e+00> : vector<8x128xf32>
    %160 = tpu.matmul %159, %0, %cst_35 {dimension_numbers = #tpu.dot_dimension_numbers<[1], [0], [0], [1], [0, 0, 1, 1], [], []>} : vector<8x32xbf16>, vector<32x128xbf16>, vector<8x128xf32> -> vector<8x128xf32>
    %161 = arith.addf %158, %160 : vector<8x128xf32>
    %162 = vector.extract_strided_slice %161 {offsets = [0, 0], sizes = [8, 96], strides = [1, 1]} : vector<8x128xf32> to vector<8x96xf32>
    %163 = arith.negf %162 : vector<8x96xf32>
    %164 = math.exp %163 : vector<8x96xf32>
    %cst_36 = arith.constant 1.000000e+00 : f32
    %165 = vector.broadcast %cst_36 : f32 to vector<8x96xf32>
    %166 = arith.addf %165, %164 : vector<8x96xf32>
    %167 = arith.divf %165, %166 : vector<8x96xf32>
    %168 = vector.extract_strided_slice %167 {offsets = [0, 0], sizes = [8, 32], strides = [1, 1]} : vector<8x96xf32> to vector<8x32xf32>
    %169 = vector.extract_strided_slice %167 {offsets = [0, 32], sizes = [8, 32], strides = [1, 1]} : vector<8x96xf32> to vector<8x32xf32>
    %170 = vector.extract_strided_slice %167 {offsets = [0, 64], sizes = [8, 32], strides = [1, 1]} : vector<8x96xf32> to vector<8x32xf32>
    %171 = vector.extract_strided_slice %161 {offsets = [0, 96], sizes = [8, 32], strides = [1, 1]} : vector<8x128xf32> to vector<8x32xf32>
    %172 = math.tanh %171 : vector<8x32xf32>
    %173 = arith.mulf %169, %154 : vector<8x32xf32>
    %174 = arith.mulf %168, %172 : vector<8x32xf32>
    %175 = arith.addf %173, %174 : vector<8x32xf32>
    %176 = math.tanh %175 : vector<8x32xf32>
    %177 = arith.mulf %170, %176 : vector<8x32xf32>
    %c56 = arith.constant 56 : index
    %c0_37 = arith.constant 0 : index
    %178 = vector.load %arg14[%c56, %c0_37] : memref<64x32xf32, #tpu.memory_space<vmem>>, vector<8x32xf32>
    tpu.vector_store %arg14[%c56, %c0_37], %177 {strides = array<i32>} : memref<64x32xf32, #tpu.memory_space<vmem>>, vector<8x32xf32>,
    %c0_38 = arith.constant 0 : index
    %c0_39 = arith.constant 0 : index
    %c0_40 = arith.constant 0 : index
    %179 = vector.load %arg12[%c0_38, %c0_39, %c0_40] : memref<2x8x32xf32, #tpu.memory_space<vmem>>, vector<1x8x32xf32>
    %180 = vector.shape_cast %179 : vector<1x8x32xf32> to vector<8x32xf32>
    %181 = vector.shape_cast %177 : vector<8x32xf32> to vector<1x8x32xf32>
    tpu.vector_store %arg12[%c0_38, %c0_39, %c0_40], %181 {strides = array<i32>} : memref<2x8x32xf32, #tpu.memory_space<vmem>>, vector<1x8x32xf32>,
    %c0_41 = arith.constant 0 : index
    %c0_42 = arith.constant 0 : index
    %c0_43 = arith.constant 0 : index
    %182 = vector.load %arg13[%c0_41, %c0_42, %c0_43] : memref<2x8x32xf32, #tpu.memory_space<vmem>>, vector<1x8x32xf32>
    %183 = vector.shape_cast %182 : vector<1x8x32xf32> to vector<8x32xf32>
    %184 = vector.shape_cast %175 : vector<8x32xf32> to vector<1x8x32xf32>
    tpu.vector_store %arg13[%c0_41, %c0_42, %c0_43], %184 {strides = array<i32>} : memref<2x8x32xf32, #tpu.memory_space<vmem>>, vector<1x8x32xf32>,
    %c0_44 = arith.constant 0 : index
    %c0_45 = arith.constant 0 : index
    %185 = vector.load %arg7[%c0_44, %c0_45] : memref<32x128xbf16, #tpu.memory_space<vmem>>, vector<32x128xbf16>
    %c0_46 = arith.constant 0 : index
    %c0_47 = arith.constant 0 : index
    %186 = vector.load %arg14[%c0_46, %c0_47] : memref<64x32xf32, #tpu.memory_space<vmem>>, vector<64x32xf32>
    %187 = arith.truncf %186 : vector<64x32xf32> to vector<64x32xbf16>
    %c0_48 = arith.constant 0 : index
    %c0_49 = arith.constant 0 : index
    %188 = vector.load %arg6[%c0_48, %c0_49] : memref<32x128xbf16, #tpu.memory_space<vmem>>, vector<32x128xbf16>
    %cst_50 = arith.constant dense<0.000000e+00> : vector<64x128xf32>
    %189 = tpu.matmul %187, %188, %cst_50 {dimension_numbers = #tpu.dot_dimension_numbers<[1], [0], [0], [1], [0, 0, 1, 1], [], []>} : vector<64x32xbf16>, vector<32x128xbf16>, vector<64x128xf32> -> vector<64x128xf32>
    %c0_51 = arith.constant 0 : index
    %c0_52 = arith.constant 0 : index
    %190 = vector.load %arg8[%c0_51, %c0_52] : memref<1x128xf32, #tpu.memory_space<vmem>>, vector<1x128xf32>
    %191 = vector.broadcast %190 : vector<1x128xf32> to vector<64x128xf32>
    %192 = arith.addf %189, %191 : vector<64x128xf32>
    %c1 = arith.constant 1 : index
    %c0_53 = arith.constant 0 : index
    %c0_54 = arith.constant 0 : index
    %193 = vector.load %arg1[%c1, %c0_53, %c0_54] : memref<2x8x32xf32, #tpu.memory_space<vmem>>, vector<1x8x32xf32>
    %194 = vector.shape_cast %193 : vector<1x8x32xf32> to vector<8x32xf32>
    %c1_55 = arith.constant 1 : index
    %c0_56 = arith.constant 0 : index
    %c0_57 = arith.constant 0 : index
    %195 = vector.load %arg2[%c1_55, %c0_56, %c0_57] : memref<2x8x32xf32, #tpu.memory_space<vmem>>, vector<1x8x32xf32>
    %196 = vector.shape_cast %195 : vector<1x8x32xf32> to vector<8x32xf32>
    %197 = vector.extract_strided_slice %192 {offsets = [0, 0], sizes = [8, 128], strides = [1, 1]} : vector<64x128xf32> to vector<8x128xf32>
    %198 = arith.truncf %194 : vector<8x32xf32> to vector<8x32xbf16>
    %cst_58 = arith.constant dense<0.000000e+00> : vector<8x128xf32>
    %199 = tpu.matmul %198, %185, %cst_58 {dimension_numbers = #tpu.dot_dimension_numbers<[1], [0], [0], [1], [0, 0, 1, 1], [], []>} : vector<8x32xbf16>, vector<32x128xbf16>, vector<8x128xf32> -> vector<8x128xf32>
    %200 = arith.addf %197, %199 : vector<8x128xf32>
    %201 = vector.extract_strided_slice %200 {offsets = [0, 0], sizes = [8, 96], strides = [1, 1]} : vector<8x128xf32> to vector<8x96xf32>
    %202 = arith.negf %201 : vector<8x96xf32>
    %203 = math.exp %202 : vector<8x96xf32>
    %cst_59 = arith.constant 1.000000e+00 : f32
    %204 = vector.broadcast %cst_59 : f32 to vector<8x96xf32>
    %205 = arith.addf %204, %203 : vector<8x96xf32>
    %206 = arith.divf %204, %205 : vector<8x96xf32>
    %207 = vector.extract_strided_slice %206 {offsets = [0, 0], sizes = [8, 32], strides = [1, 1]} : vector<8x96xf32> to vector<8x32xf32>
    %208 = vector.extract_strided_slice %206 {offsets = [0, 32], sizes = [8, 32], strides = [1, 1]} : vector<8x96xf32> to vector<8x32xf32>
    %209 = vector.extract_strided_slice %206 {offsets = [0, 64], sizes = [8, 32], strides = [1, 1]} : vector<8x96xf32> to vector<8x32xf32>
    %210 = vector.extract_strided_slice %200 {offsets = [0, 96], sizes = [8, 32], strides = [1, 1]} : vector<8x128xf32> to vector<8x32xf32>
    %211 = math.tanh %210 : vector<8x32xf32>
    %212 = arith.mulf %208, %196 : vector<8x32xf32>
    %213 = arith.mulf %207, %211 : vector<8x32xf32>
    %214 = arith.addf %212, %213 : vector<8x32xf32>
    %215 = math.tanh %214 : vector<8x32xf32>
    %216 = arith.mulf %209, %215 : vector<8x32xf32>
    %c0_60 = arith.constant 0 : index
    %c0_61 = arith.constant 0 : index
    %217 = vector.load %arg14[%c0_60, %c0_61] : memref<64x32xf32, #tpu.memory_space<vmem>>, vector<8x32xf32>
    tpu.vector_store %arg14[%c0_60, %c0_61], %216 {strides = array<i32>} : memref<64x32xf32, #tpu.memory_space<vmem>>, vector<8x32xf32>,
    %218 = vector.extract_strided_slice %192 {offsets = [8, 0], sizes = [8, 128], strides = [1, 1]} : vector<64x128xf32> to vector<8x128xf32>
    %219 = arith.truncf %216 : vector<8x32xf32> to vector<8x32xbf16>
    %cst_62 = arith.constant dense<0.000000e+00> : vector<8x128xf32>
    %220 = tpu.matmul %219, %185, %cst_62 {dimension_numbers = #tpu.dot_dimension_numbers<[1], [0], [0], [1], [0, 0, 1, 1], [], []>} : vector<8x32xbf16>, vector<32x128xbf16>, vector<8x128xf32> -> vector<8x128xf32>
    %221 = arith.addf %218, %220 : vector<8x128xf32>
    %222 = vector.extract_strided_slice %221 {offsets = [0, 0], sizes = [8, 96], strides = [1, 1]} : vector<8x128xf32> to vector<8x96xf32>
    %223 = arith.negf %222 : vector<8x96xf32>
    %224 = math.exp %223 : vector<8x96xf32>
    %cst_63 = arith.constant 1.000000e+00 : f32
    %225 = vector.broadcast %cst_63 : f32 to vector<8x96xf32>
    %226 = arith.addf %225, %224 : vector<8x96xf32>
    %227 = arith.divf %225, %226 : vector<8x96xf32>
    %228 = vector.extract_strided_slice %227 {offsets = [0, 0], sizes = [8, 32], strides = [1, 1]} : vector<8x96xf32> to vector<8x32xf32>
    %229 = vector.extract_strided_slice %227 {offsets = [0, 32], sizes = [8, 32], strides = [1, 1]} : vector<8x96xf32> to vector<8x32xf32>
    %230 = vector.extract_strided_slice %227 {offsets = [0, 64], sizes = [8, 32], strides = [1, 1]} : vector<8x96xf32> to vector<8x32xf32>
    %231 = vector.extract_strided_slice %221 {offsets = [0, 96], sizes = [8, 32], strides = [1, 1]} : vector<8x128xf32> to vector<8x32xf32>
    %232 = math.tanh %231 : vector<8x32xf32>
    %233 = arith.mulf %229, %214 : vector<8x32xf32>
    %234 = arith.mulf %228, %232 : vector<8x32xf32>
    %235 = arith.addf %233, %234 : vector<8x32xf32>
    %236 = math.tanh %235 : vector<8x32xf32>
    %237 = arith.mulf %230, %236 : vector<8x32xf32>
    %c8_64 = arith.constant 8 : index
    %c0_65 = arith.constant 0 : index
    %238 = vector.load %arg14[%c8_64, %c0_65] : memref<64x32xf32, #tpu.memory_space<vmem>>, vector<8x32xf32>
    tpu.vector_store %arg14[%c8_64, %c0_65], %237 {strides = array<i32>} : memref<64x32xf32, #tpu.memory_space<vmem>>, vector<8x32xf32>,
    %239 = vector.extract_strided_slice %192 {offsets = [16, 0], sizes = [8, 128], strides = [1, 1]} : vector<64x128xf32> to vector<8x128xf32>
    %240 = arith.truncf %237 : vector<8x32xf32> to vector<8x32xbf16>
    %cst_66 = arith.constant dense<0.000000e+00> : vector<8x128xf32>
    %241 = tpu.matmul %240, %185, %cst_66 {dimension_numbers = #tpu.dot_dimension_numbers<[1], [0], [0], [1], [0, 0, 1, 1], [], []>} : vector<8x32xbf16>, vector<32x128xbf16>, vector<8x128xf32> -> vector<8x128xf32>
    %242 = arith.addf %239, %241 : vector<8x128xf32>
    %243 = vector.extract_strided_slice %242 {offsets = [0, 0], sizes = [8, 96], strides = [1, 1]} : vector<8x128xf32> to vector<8x96xf32>
    %244 = arith.negf %243 : vector<8x96xf32>
    %245 = math.exp %244 : vector<8x96xf32>
    %cst_67 = arith.constant 1.000000e+00 : f32
    %246 = vector.broadcast %cst_67 : f32 to vector<8x96xf32>
    %247 = arith.addf %246, %245 : vector<8x96xf32>
    %248 = arith.divf %246, %247 : vector<8x96xf32>
    %249 = vector.extract_strided_slice %248 {offsets = [0, 0], sizes = [8, 32], strides = [1, 1]} : vector<8x96xf32> to vector<8x32xf32>
    %250 = vector.extract_strided_slice %248 {offsets = [0, 32], sizes = [8, 32], strides = [1, 1]} : vector<8x96xf32> to vector<8x32xf32>
    %251 = vector.extract_strided_slice %248 {offsets = [0, 64], sizes = [8, 32], strides = [1, 1]} : vector<8x96xf32> to vector<8x32xf32>
    %252 = vector.extract_strided_slice %242 {offsets = [0, 96], sizes = [8, 32], strides = [1, 1]} : vector<8x128xf32> to vector<8x32xf32>
    %253 = math.tanh %252 : vector<8x32xf32>
    %254 = arith.mulf %250, %235 : vector<8x32xf32>
    %255 = arith.mulf %249, %253 : vector<8x32xf32>
    %256 = arith.addf %254, %255 : vector<8x32xf32>
    %257 = math.tanh %256 : vector<8x32xf32>
    %258 = arith.mulf %251, %257 : vector<8x32xf32>
    %c16_68 = arith.constant 16 : index
    %c0_69 = arith.constant 0 : index
    %259 = vector.load %arg14[%c16_68, %c0_69] : memref<64x32xf32, #tpu.memory_space<vmem>>, vector<8x32xf32>
    tpu.vector_store %arg14[%c16_68, %c0_69], %258 {strides = array<i32>} : memref<64x32xf32, #tpu.memory_space<vmem>>, vector<8x32xf32>,
    %260 = vector.extract_strided_slice %192 {offsets = [24, 0], sizes = [8, 128], strides = [1, 1]} : vector<64x128xf32> to vector<8x128xf32>
    %261 = arith.truncf %258 : vector<8x32xf32> to vector<8x32xbf16>
    %cst_70 = arith.constant dense<0.000000e+00> : vector<8x128xf32>
    %262 = tpu.matmul %261, %185, %cst_70 {dimension_numbers = #tpu.dot_dimension_numbers<[1], [0], [0], [1], [0, 0, 1, 1], [], []>} : vector<8x32xbf16>, vector<32x128xbf16>, vector<8x128xf32> -> vector<8x128xf32>
    %263 = arith.addf %260, %262 : vector<8x128xf32>
    %264 = vector.extract_strided_slice %263 {offsets = [0, 0], sizes = [8, 96], strides = [1, 1]} : vector<8x128xf32> to vector<8x96xf32>
    %265 = arith.negf %264 : vector<8x96xf32>
    %266 = math.exp %265 : vector<8x96xf32>
    %cst_71 = arith.constant 1.000000e+00 : f32
    %267 = vector.broadcast %cst_71 : f32 to vector<8x96xf32>
    %268 = arith.addf %267, %266 : vector<8x96xf32>
    %269 = arith.divf %267, %268 : vector<8x96xf32>
    %270 = vector.extract_strided_slice %269 {offsets = [0, 0], sizes = [8, 32], strides = [1, 1]} : vector<8x96xf32> to vector<8x32xf32>
    %271 = vector.extract_strided_slice %269 {offsets = [0, 32], sizes = [8, 32], strides = [1, 1]} : vector<8x96xf32> to vector<8x32xf32>
    %272 = vector.extract_strided_slice %269 {offsets = [0, 64], sizes = [8, 32], strides = [1, 1]} : vector<8x96xf32> to vector<8x32xf32>
    %273 = vector.extract_strided_slice %263 {offsets = [0, 96], sizes = [8, 32], strides = [1, 1]} : vector<8x128xf32> to vector<8x32xf32>
    %274 = math.tanh %273 : vector<8x32xf32>
    %275 = arith.mulf %271, %256 : vector<8x32xf32>
    %276 = arith.mulf %270, %274 : vector<8x32xf32>
    %277 = arith.addf %275, %276 : vector<8x32xf32>
    %278 = math.tanh %277 : vector<8x32xf32>
    %279 = arith.mulf %272, %278 : vector<8x32xf32>
    %c24_72 = arith.constant 24 : index
    %c0_73 = arith.constant 0 : index
    %280 = vector.load %arg14[%c24_72, %c0_73] : memref<64x32xf32, #tpu.memory_space<vmem>>, vector<8x32xf32>
    tpu.vector_store %arg14[%c24_72, %c0_73], %279 {strides = array<i32>} : memref<64x32xf32, #tpu.memory_space<vmem>>, vector<8x32xf32>,
    %281 = vector.extract_strided_slice %192 {offsets = [32, 0], sizes = [8, 128], strides = [1, 1]} : vector<64x128xf32> to vector<8x128xf32>
    %282 = arith.truncf %279 : vector<8x32xf32> to vector<8x32xbf16>
    %cst_74 = arith.constant dense<0.000000e+00> : vector<8x128xf32>
    %283 = tpu.matmul %282, %185, %cst_74 {dimension_numbers = #tpu.dot_dimension_numbers<[1], [0], [0], [1], [0, 0, 1, 1], [], []>} : vector<8x32xbf16>, vector<32x128xbf16>, vector<8x128xf32> -> vector<8x128xf32>
    %284 = arith.addf %281, %283 : vector<8x128xf32>
    %285 = vector.extract_strided_slice %284 {offsets = [0, 0], sizes = [8, 96], strides = [1, 1]} : vector<8x128xf32> to vector<8x96xf32>
    %286 = arith.negf %285 : vector<8x96xf32>
    %287 = math.exp %286 : vector<8x96xf32>
    %cst_75 = arith.constant 1.000000e+00 : f32
    %288 = vector.broadcast %cst_75 : f32 to vector<8x96xf32>
    %289 = arith.addf %288, %287 : vector<8x96xf32>
    %290 = arith.divf %288, %289 : vector<8x96xf32>
    %291 = vector.extract_strided_slice %290 {offsets = [0, 0], sizes = [8, 32], strides = [1, 1]} : vector<8x96xf32> to vector<8x32xf32>
    %292 = vector.extract_strided_slice %290 {offsets = [0, 32], sizes = [8, 32], strides = [1, 1]} : vector<8x96xf32> to vector<8x32xf32>
    %293 = vector.extract_strided_slice %290 {offsets = [0, 64], sizes = [8, 32], strides = [1, 1]} : vector<8x96xf32> to vector<8x32xf32>
    %294 = vector.extract_strided_slice %284 {offsets = [0, 96], sizes = [8, 32], strides = [1, 1]} : vector<8x128xf32> to vector<8x32xf32>
    %295 = math.tanh %294 : vector<8x32xf32>
    %296 = arith.mulf %292, %277 : vector<8x32xf32>
    %297 = arith.mulf %291, %295 : vector<8x32xf32>
    %298 = arith.addf %296, %297 : vector<8x32xf32>
    %299 = math.tanh %298 : vector<8x32xf32>
    %300 = arith.mulf %293, %299 : vector<8x32xf32>
    %c32_76 = arith.constant 32 : index
    %c0_77 = arith.constant 0 : index
    %301 = vector.load %arg14[%c32_76, %c0_77] : memref<64x32xf32, #tpu.memory_space<vmem>>, vector<8x32xf32>
    tpu.vector_store %arg14[%c32_76, %c0_77], %300 {strides = array<i32>} : memref<64x32xf32, #tpu.memory_space<vmem>>, vector<8x32xf32>,
    %302 = vector.extract_strided_slice %192 {offsets = [40, 0], sizes = [8, 128], strides = [1, 1]} : vector<64x128xf32> to vector<8x128xf32>
    %303 = arith.truncf %300 : vector<8x32xf32> to vector<8x32xbf16>
    %cst_78 = arith.constant dense<0.000000e+00> : vector<8x128xf32>
    %304 = tpu.matmul %303, %185, %cst_78 {dimension_numbers = #tpu.dot_dimension_numbers<[1], [0], [0], [1], [0, 0, 1, 1], [], []>} : vector<8x32xbf16>, vector<32x128xbf16>, vector<8x128xf32> -> vector<8x128xf32>
    %305 = arith.addf %302, %304 : vector<8x128xf32>
    %306 = vector.extract_strided_slice %305 {offsets = [0, 0], sizes = [8, 96], strides = [1, 1]} : vector<8x128xf32> to vector<8x96xf32>
    %307 = arith.negf %306 : vector<8x96xf32>
    %308 = math.exp %307 : vector<8x96xf32>
    %cst_79 = arith.constant 1.000000e+00 : f32
    %309 = vector.broadcast %cst_79 : f32 to vector<8x96xf32>
    %310 = arith.addf %309, %308 : vector<8x96xf32>
    %311 = arith.divf %309, %310 : vector<8x96xf32>
    %312 = vector.extract_strided_slice %311 {offsets = [0, 0], sizes = [8, 32], strides = [1, 1]} : vector<8x96xf32> to vector<8x32xf32>
    %313 = vector.extract_strided_slice %311 {offsets = [0, 32], sizes = [8, 32], strides = [1, 1]} : vector<8x96xf32> to vector<8x32xf32>
    %314 = vector.extract_strided_slice %311 {offsets = [0, 64], sizes = [8, 32], strides = [1, 1]} : vector<8x96xf32> to vector<8x32xf32>
    %315 = vector.extract_strided_slice %305 {offsets = [0, 96], sizes = [8, 32], strides = [1, 1]} : vector<8x128xf32> to vector<8x32xf32>
    %316 = math.tanh %315 : vector<8x32xf32>
    %317 = arith.mulf %313, %298 : vector<8x32xf32>
    %318 = arith.mulf %312, %316 : vector<8x32xf32>
    %319 = arith.addf %317, %318 : vector<8x32xf32>
    %320 = math.tanh %319 : vector<8x32xf32>
    %321 = arith.mulf %314, %320 : vector<8x32xf32>
    %c40_80 = arith.constant 40 : index
    %c0_81 = arith.constant 0 : index
    %322 = vector.load %arg14[%c40_80, %c0_81] : memref<64x32xf32, #tpu.memory_space<vmem>>, vector<8x32xf32>
    tpu.vector_store %arg14[%c40_80, %c0_81], %321 {strides = array<i32>} : memref<64x32xf32, #tpu.memory_space<vmem>>, vector<8x32xf32>,
    %323 = vector.extract_strided_slice %192 {offsets = [48, 0], sizes = [8, 128], strides = [1, 1]} : vector<64x128xf32> to vector<8x128xf32>
    %324 = arith.truncf %321 : vector<8x32xf32> to vector<8x32xbf16>
    %cst_82 = arith.constant dense<0.000000e+00> : vector<8x128xf32>
    %325 = tpu.matmul %324, %185, %cst_82 {dimension_numbers = #tpu.dot_dimension_numbers<[1], [0], [0], [1], [0, 0, 1, 1], [], []>} : vector<8x32xbf16>, vector<32x128xbf16>, vector<8x128xf32> -> vector<8x128xf32>
    %326 = arith.addf %323, %325 : vector<8x128xf32>
    %327 = vector.extract_strided_slice %326 {offsets = [0, 0], sizes = [8, 96], strides = [1, 1]} : vector<8x128xf32> to vector<8x96xf32>
    %328 = arith.negf %327 : vector<8x96xf32>
    %329 = math.exp %328 : vector<8x96xf32>
    %cst_83 = arith.constant 1.000000e+00 : f32
    %330 = vector.broadcast %cst_83 : f32 to vector<8x96xf32>
    %331 = arith.addf %330, %329 : vector<8x96xf32>
    %332 = arith.divf %330, %331 : vector<8x96xf32>
    %333 = vector.extract_strided_slice %332 {offsets = [0, 0], sizes = [8, 32], strides = [1, 1]} : vector<8x96xf32> to vector<8x32xf32>
    %334 = vector.extract_strided_slice %332 {offsets = [0, 32], sizes = [8, 32], strides = [1, 1]} : vector<8x96xf32> to vector<8x32xf32>
    %335 = vector.extract_strided_slice %332 {offsets = [0, 64], sizes = [8, 32], strides = [1, 1]} : vector<8x96xf32> to vector<8x32xf32>
    %336 = vector.extract_strided_slice %326 {offsets = [0, 96], sizes = [8, 32], strides = [1, 1]} : vector<8x128xf32> to vector<8x32xf32>
    %337 = math.tanh %336 : vector<8x32xf32>
    %338 = arith.mulf %334, %319 : vector<8x32xf32>
    %339 = arith.mulf %333, %337 : vector<8x32xf32>
    %340 = arith.addf %338, %339 : vector<8x32xf32>
    %341 = math.tanh %340 : vector<8x32xf32>
    %342 = arith.mulf %335, %341 : vector<8x32xf32>
    %c48_84 = arith.constant 48 : index
    %c0_85 = arith.constant 0 : index
    %343 = vector.load %arg14[%c48_84, %c0_85] : memref<64x32xf32, #tpu.memory_space<vmem>>, vector<8x32xf32>
    tpu.vector_store %arg14[%c48_84, %c0_85], %342 {strides = array<i32>} : memref<64x32xf32, #tpu.memory_space<vmem>>, vector<8x32xf32>,
    %344 = vector.extract_strided_slice %192 {offsets = [56, 0], sizes = [8, 128], strides = [1, 1]} : vector<64x128xf32> to vector<8x128xf32>
    %345 = arith.truncf %342 : vector<8x32xf32> to vector<8x32xbf16>
    %cst_86 = arith.constant dense<0.000000e+00> : vector<8x128xf32>
    %346 = tpu.matmul %345, %185, %cst_86 {dimension_numbers = #tpu.dot_dimension_numbers<[1], [0], [0], [1], [0, 0, 1, 1], [], []>} : vector<8x32xbf16>, vector<32x128xbf16>, vector<8x128xf32> -> vector<8x128xf32>
    %347 = arith.addf %344, %346 : vector<8x128xf32>
    %348 = vector.extract_strided_slice %347 {offsets = [0, 0], sizes = [8, 96], strides = [1, 1]} : vector<8x128xf32> to vector<8x96xf32>
    %349 = arith.negf %348 : vector<8x96xf32>
    %350 = math.exp %349 : vector<8x96xf32>
    %cst_87 = arith.constant 1.000000e+00 : f32
    %351 = vector.broadcast %cst_87 : f32 to vector<8x96xf32>
    %352 = arith.addf %351, %350 : vector<8x96xf32>
    %353 = arith.divf %351, %352 : vector<8x96xf32>
    %354 = vector.extract_strided_slice %353 {offsets = [0, 0], sizes = [8, 32], strides = [1, 1]} : vector<8x96xf32> to vector<8x32xf32>
    %355 = vector.extract_strided_slice %353 {offsets = [0, 32], sizes = [8, 32], strides = [1, 1]} : vector<8x96xf32> to vector<8x32xf32>
    %356 = vector.extract_strided_slice %353 {offsets = [0, 64], sizes = [8, 32], strides = [1, 1]} : vector<8x96xf32> to vector<8x32xf32>
    %357 = vector.extract_strided_slice %347 {offsets = [0, 96], sizes = [8, 32], strides = [1, 1]} : vector<8x128xf32> to vector<8x32xf32>
    %358 = math.tanh %357 : vector<8x32xf32>
    %359 = arith.mulf %355, %340 : vector<8x32xf32>
    %360 = arith.mulf %354, %358 : vector<8x32xf32>
    %361 = arith.addf %359, %360 : vector<8x32xf32>
    %362 = math.tanh %361 : vector<8x32xf32>
    %363 = arith.mulf %356, %362 : vector<8x32xf32>
    %c56_88 = arith.constant 56 : index
    %c0_89 = arith.constant 0 : index
    %364 = vector.load %arg14[%c56_88, %c0_89] : memref<64x32xf32, #tpu.memory_space<vmem>>, vector<8x32xf32>
    tpu.vector_store %arg14[%c56_88, %c0_89], %363 {strides = array<i32>} : memref<64x32xf32, #tpu.memory_space<vmem>>, vector<8x32xf32>,
    %c1_90 = arith.constant 1 : index
    %c0_91 = arith.constant 0 : index
    %c0_92 = arith.constant 0 : index
    %365 = vector.load %arg12[%c1_90, %c0_91, %c0_92] : memref<2x8x32xf32, #tpu.memory_space<vmem>>, vector<1x8x32xf32>
    %366 = vector.shape_cast %365 : vector<1x8x32xf32> to vector<8x32xf32>
    %367 = vector.shape_cast %363 : vector<8x32xf32> to vector<1x8x32xf32>
    tpu.vector_store %arg12[%c1_90, %c0_91, %c0_92], %367 {strides = array<i32>} : memref<2x8x32xf32, #tpu.memory_space<vmem>>, vector<1x8x32xf32>,
    %c1_93 = arith.constant 1 : index
    %c0_94 = arith.constant 0 : index
    %c0_95 = arith.constant 0 : index
    %368 = vector.load %arg13[%c1_93, %c0_94, %c0_95] : memref<2x8x32xf32, #tpu.memory_space<vmem>>, vector<1x8x32xf32>
    %369 = vector.shape_cast %368 : vector<1x8x32xf32> to vector<8x32xf32>
    %370 = vector.shape_cast %361 : vector<8x32xf32> to vector<1x8x32xf32>
    tpu.vector_store %arg13[%c1_93, %c0_94, %c0_95], %370 {strides = array<i32>} : memref<2x8x32xf32, #tpu.memory_space<vmem>>, vector<1x8x32xf32>,
    %c0_96 = arith.constant 0 : index
    %c0_97 = arith.constant 0 : index
    %371 = vector.load %arg14[%c0_96, %c0_97] : memref<64x32xf32, #tpu.memory_space<vmem>>, vector<64x32xf32>
    %372 = arith.truncf %371 : vector<64x32xf32> to vector<64x32xbf16>
    %c0_98 = arith.constant 0 : index
    %c0_99 = arith.constant 0 : index
    %373 = vector.load %arg9[%c0_98, %c0_99] : memref<32x128xbf16, #tpu.memory_space<vmem>>, vector<32x128xbf16>
    %cst_100 = arith.constant dense<0.000000e+00> : vector<64x128xf32>
    %374 = tpu.matmul %372, %373, %cst_100 {dimension_numbers = #tpu.dot_dimension_numbers<[1], [0], [0], [1], [0, 0, 1, 1], [], []>} : vector<64x32xbf16>, vector<32x128xbf16>, vector<64x128xf32> -> vector<64x128xf32>
    %c0_101 = arith.constant 0 : index
    %c0_102 = arith.constant 0 : index
    %375 = vector.load %arg10[%c0_101, %c0_102] : memref<1x128xf32, #tpu.memory_space<vmem>>, vector<1x128xf32>
    %376 = vector.broadcast %375 : vector<1x128xf32> to vector<64x128xf32>
    %377 = arith.addf %374, %376 : vector<64x128xf32>
    %c0_103 = arith.constant 0 : index
    %c0_104 = arith.constant 0 : index
    %378 = vector.load %arg11[%c0_103, %c0_104] : memref<64x128xf32, #tpu.memory_space<vmem>>, vector<64x128xf32>
    tpu.vector_store %arg11[%c0_103, %c0_104], %377 {strides = array<i32>} : memref<64x128xf32, #tpu.memory_space<vmem>>, vector<64x128xf32>,
    return
  }
}

</mosaic_0001>

<llo_original>
// kernel: lstm_decoder_forward.1
$region0: #{lstm_decoder_forward.1}
  #allocation0 [shape = 'u32[]', space=smem, size = 0x4, offset = 0x4, fixed_abs, tag = 'smem constant byte address 0x4 - core index']
  #allocation1 [shape = 'u32[144,128]{1,0:T(1,128)}', space=vmem, size = 0x12000, scoped, tag = 'internal scratch']
  #allocation2 [shape = 'f32[64,32]{1,0:T(8,128)}', space=vmem, size = 0x8000, scoped, tag = 'scratch operand']
  %s0 = inlined_call_operand.vmem [shape: bf16[64,4], index: 0, kind: input, shape index: {}]
  %s1 = inlined_call_operand.vmem [shape: f32[2,8,32], index: 1, kind: input, shape index: {}]
  %s2 = inlined_call_operand.vmem [shape: f32[2,8,32], index: 2, kind: input, shape index: {}]
  %s3 = inlined_call_operand.vmem [shape: bf16[4,128], index: 3, kind: input, shape index: {}]
  %s4 = inlined_call_operand.vmem [shape: bf16[32,128], index: 4, kind: input, shape index: {}]
  %s5 = inlined_call_operand.vmem [shape: f32[1,128], index: 5, kind: input, shape index: {}]
  %s6 = inlined_call_operand.vmem [shape: bf16[32,128], index: 6, kind: input, shape index: {}]
  %s7 = inlined_call_operand.vmem [shape: bf16[32,128], index: 7, kind: input, shape index: {}]
  %s8 = inlined_call_operand.vmem [shape: f32[1,128], index: 8, kind: input, shape index: {}]
  %s9 = inlined_call_operand.vmem [shape: bf16[32,128], index: 9, kind: input, shape index: {}]
  %s10 = inlined_call_operand.vmem [shape: f32[1,128], index: 10, kind: input, shape index: {}]
  %s11 = inlined_call_operand.vmem [shape: f32[64,128], index: 11, kind: output, shape index: {0}]
  %s12 = inlined_call_operand.vmem [shape: f32[2,8,32], index: 12, kind: output, shape index: {1}]
  %s13 = inlined_call_operand.vmem [shape: f32[2,8,32], index: 13, kind: output, shape index: {2}]
  %14 = xla_tuple %s11, %s12, %s13
  %s15 = sld [smem:[#allocation0]]
  $region70: #{lstm_decoder_forward.1} parent=0
    _
  %s17 = ssub.s32 1, %s15
  %s18 = scalar_select 0, %s17, %s15
  // Predicated region
  $region2: #{lstm_decoder_forward.1} parent=0 // pred_check
    _
  $region3: #{lstm_decoder_forward.1} parent=0 // pred_check_branch
    %20 = sbr.rel (0) target = $region5
  $region4: #{lstm_decoder_forward.1} parent=0 // pred_region
    _
  $region5: #{lstm_decoder_forward.1} parent=0 // pred_fallthru
    _
  // Predicated region
  $region6: #{lstm_decoder_forward.1} parent=0 // pred_check
    _
  $region7: #{lstm_decoder_forward.1} parent=0 // pred_check_branch
    %22 = sbr.rel (0) target = $region9
  $region8: #{lstm_decoder_forward.1} parent=0 // pred_region
    _
  $region9: #{lstm_decoder_forward.1} parent=0 // pred_fallthru
    _
  // Predicated region
  $region10: #{lstm_decoder_forward.1} parent=0 // pred_check
    _
  $region11: #{lstm_decoder_forward.1} parent=0 // pred_check_branch
    %24 = sbr.rel (0) target = $region13
  $region12: #{lstm_decoder_forward.1} parent=0 // pred_region
    _
  $region13: #{lstm_decoder_forward.1} parent=0 // pred_fallthru
    _
  // Predicated region
  $region14: #{lstm_decoder_forward.1} parent=0 // pred_check
    _
  $region15: #{lstm_decoder_forward.1} parent=0 // pred_check_branch
    %26 = sbr.rel (0) target = $region17
  $region16: #{lstm_decoder_forward.1} parent=0 // pred_region
    _
  $region17: #{lstm_decoder_forward.1} parent=0 // pred_fallthru
    _
  // Predicated region
  $region18: #{lstm_decoder_forward.1} parent=0 // pred_check
    _
  $region19: #{lstm_decoder_forward.1} parent=0 // pred_check_branch
    %28 = sbr.rel (0) target = $region21
  $region20: #{lstm_decoder_forward.1} parent=0 // pred_region
    _
  $region21: #{lstm_decoder_forward.1} parent=0 // pred_fallthru
    _
  // Predicated region
  $region22: #{lstm_decoder_forward.1} parent=0 // pred_check
    _
  $region23: #{lstm_decoder_forward.1} parent=0 // pred_check_branch
    %30 = sbr.rel (0) target = $region25
  $region24: #{lstm_decoder_forward.1} parent=0 // pred_region
    _
  $region25: #{lstm_decoder_forward.1} parent=0 // pred_fallthru
    _
  // Predicated region
  $region26: #{lstm_decoder_forward.1} parent=0 // pred_check
    _
  $region27: #{lstm_decoder_forward.1} parent=0 // pred_check_branch
    %32 = sbr.rel (0) target = $region29
  $region28: #{lstm_decoder_forward.1} parent=0 // pred_region
    _
  $region29: #{lstm_decoder_forward.1} parent=0 // pred_fallthru
    _
  // Predicated region
  $region30: #{lstm_decoder_forward.1} parent=0 // pred_check
    _
  $region31: #{lstm_decoder_forward.1} parent=0 // pred_check_branch
    %34 = sbr.rel (0) target = $region33
  $region32: #{lstm_decoder_forward.1} parent=0 // pred_region
    _
  $region33: #{lstm_decoder_forward.1} parent=0 // pred_fallthru
    _
  // Predicated region
  $region34: #{lstm_decoder_forward.1} parent=0 // pred_check
    _
  $region35: #{lstm_decoder_forward.1} parent=0 // pred_check_branch
    %36 = sbr.rel (0) target = $region37
  $region36: #{lstm_decoder_forward.1} parent=0 // pred_region
    _
  $region37: #{lstm_decoder_forward.1} parent=0 // pred_fallthru
    _
  // Predicated region
  $region38: #{lstm_decoder_forward.1} parent=0 // pred_check
    _
  $region39: #{lstm_decoder_forward.1} parent=0 // pred_check_branch
    %38 = sbr.rel (0) target = $region41
  $region40: #{lstm_decoder_forward.1} parent=0 // pred_region
    _
  $region41: #{lstm_decoder_forward.1} parent=0 // pred_fallthru
    _
  // Predicated region
  $region42: #{lstm_decoder_forward.1} parent=0 // pred_check
    _
  $region43: #{lstm_decoder_forward.1} parent=0 // pred_check_branch
    %40 = sbr.rel (0) target = $region45
  $region44: #{lstm_decoder_forward.1} parent=0 // pred_region
    _
  $region45: #{lstm_decoder_forward.1} parent=0 // pred_fallthru
    _
  %v42 = vld [vmem:[%s4] sm:$0xf]
  %v43 = vld [vmem:[%s4 + $0x4] sm:$0xf]
  %v44 = vld [vmem:[%s4 + $0x8] sm:$0xf]
  %v45 = vld [vmem:[%s4 + $0xc] sm:$0xf]
  %v46 = vld [vmem:[%s0] sm:$0xf]
  %v47 = vld [vmem:[%s0 + $0x4] sm:$0xf]
  %v48 = vld [vmem:[%s0 + $0x8] sm:$0xf]
  %v49 = vld [vmem:[%s0 + $0xc] sm:$0xf]
  %v50 = vld [vmem:[%s0 + $0x10] sm:$0xf]
  %v51 = vld [vmem:[%s0 + $0x14] sm:$0xf]
  %v52 = vld [vmem:[%s0 + $0x18] sm:$0xf]
  %v53 = vld [vmem:[%s0 + $0x1c] sm:$0xf]
  %v54 = vld [vmem:[%s3] sm:$0x3]
  %v55 = vld [vmem:[%s5] sm:$0x1]
  %v57 = vlaneseq
  %v58 = vshrl.u32 %v57, 7
  %v59 = vsub.s32 0, %v58
  %v60 = vrot.slane %v55, %v59
  %v70 = vunpack.c.l.b16 %v46
  %v71 = vunpack.c.l.b16 %v47
  %v72 = vunpack.c.l.b16 %v48
  %v73 = vunpack.c.l.b16 %v49
  %v74 = vunpack.c.l.b16 %v50
  %v75 = vunpack.c.l.b16 %v51
  %v76 = vunpack.c.l.b16 %v52
  %v77 = vunpack.c.l.b16 %v53
  %v78 = vpack.c.b16 %v71, %v70
  %v79 = vpack.c.b16 %v73, %v72
  %v80 = vpack.c.b16 %v75, %v74
  %v81 = vpack.c.b16 %v77, %v76
  %vm82 = vcmask 31744
  %v84 = vsel %vm82, %v78, 0
  %v87 = vsel %vm82, %v79, 0
  %v90 = vsel %vm82, %v80, 0
  %v93 = vsel %vm82, %v81, 0
  %vm95 = vcmask 1041408
  %v97 = vsel %vm95, %v54, 0
  %99 = vmatprep.subr.bf16.mxu0 0
  %100 = vmatpush1.bf16.msra.mxu0 %v97
  %101 = vmatprep.subr.bf16.mxu0 0
  %102 = vmatpush1.bf16.msra.mxu0 0
  %103 = vmatprep.subr.bf16.mxu0 0
  %104 = vmatpush1.bf16.msra.mxu0 0
  %105 = vmatprep.subr.bf16.mxu0 0
  %106 = vmatpush1.bf16.msra.mxu0 0
  %107 = vmatprep.subr.bf16.mxu0 0
  %108 = vmatpush1.bf16.msra.mxu0 0
  %109 = vmatprep.subr.bf16.mxu0 0
  %110 = vmatpush1.bf16.msra.mxu0 0
  %111 = vmatprep.subr.bf16.mxu0 0
  %112 = vmatpush1.bf16.msra.mxu0 0
  %113 = vmatprep.subr.bf16.mxu0 0
  %114 = vmatpush1.bf16.msra.mxu0 0
  %115 = vmatprep.subr.bf16.mxu0 0
  %116 = vmatpush1.bf16.msra.mxu0 0
  %117 = vmatprep.subr.bf16.mxu0 0
  %118 = vmatpush1.bf16.msra.mxu0 0
  %119 = vmatprep.subr.bf16.mxu0 0
  %120 = vmatpush1.bf16.msra.mxu0 0
  %121 = vmatprep.subr.bf16.mxu0 0
  %122 = vmatpush1.bf16.msra.mxu0 0
  %123 = vmatprep.subr.bf16.mxu0 0
  %124 = vmatpush1.bf16.msra.mxu0 0
  %125 = vmatprep.subr.bf16.mxu0 0
  %126 = vmatpush1.bf16.msra.mxu0 0
  %127 = vmatprep.subr.bf16.mxu0 0
  %128 = vmatpush1.bf16.msra.mxu0 0
  %129 = vmatprep.subr.bf16.mxu0 0
  %130 = vmatpush1.bf16.msra.mxu0 0
  %131 = vmatprep.mubr.bf16.mxu0 0
  %132 = vmatmul.mubr.bf16.gmra.mrb[0].mxu0 %v84
  %v133 = vpop.f32.mrb[0].mxu0
  %v134 = vadd.f32 %v60, %v133
  %v135 = vpop.f32.mrb[0].mxu0
  %v136 = vpop.f32.mrb[0].mxu0
  %v137 = vadd.f32 %v60, %v136
  %v138 = vpop.f32.mrb[0].mxu0
  %139 = vmatprep.mubr.bf16.mxu0 0
  %140 = vmatmul.mubr.bf16.gmra.mrb[0].mxu0 %v87
  %v141 = vpop.f32.mrb[0].mxu0
  %v142 = vadd.f32 %v60, %v141
  %v143 = vpop.f32.mrb[0].mxu0
  %v144 = vpop.f32.mrb[0].mxu0
  %v145 = vadd.f32 %v60, %v144
  %v146 = vpop.f32.mrb[0].mxu0
  %147 = vmatprep.mubr.bf16.mxu0 0
  %148 = vmatmul.mubr.bf16.gmra.mrb[0].mxu0 %v90
  %v149 = vpop.f32.mrb[0].mxu0
  %v150 = vadd.f32 %v60, %v149
  %v151 = vpop.f32.mrb[0].mxu0
  %v152 = vpop.f32.mrb[0].mxu0
  %v153 = vadd.f32 %v60, %v152
  %v154 = vpop.f32.mrb[0].mxu0
  %155 = vmatprep.mubr.bf16.mxu0 0
  %156 = vmatmul.mubr.bf16.gmra.mrb[0].mxu0 %v93
  %v157 = vpop.f32.mrb[0].mxu0
  %v158 = vadd.f32 %v60, %v157
  %v159 = vpop.f32.mrb[0].mxu0
  %v160 = vpop.f32.mrb[0].mxu0
  %v161 = vadd.f32 %v60, %v160
  %v162 = vpop.f32.mrb[0].mxu0
  %163 = vdwg.mxu0
  %v164 = vld [vmem:[%s1] sm:$0xff]
  %v165 = vld [vmem:[%s2] sm:$0xff]
  %v166 = vpack.c.bf16 %v164, %v164
  %v171 = vunpack.c.l.b16 %v42
  %v172 = vunpack.c.l.b16 %v43
  %v173 = vunpack.c.l.b16 %v44
  %v174 = vunpack.c.l.b16 %v45
  %v175 = vpack.c.b16 %v172, %v171
  %v176 = vpack.c.b16 %v174, %v173
  %vm179 = vcmask 261120
  %v181 = vsel %vm179, %v166, 0
  %183 = vmatprep.subr.bf16.mxu0 0
  %184 = vmatpush1.bf16.msra.mxu0 %v175
  %185 = vmatprep.subr.bf16.mxu0 0
  %186 = vmatpush1.bf16.msra.mxu0 %v176
  %187 = vmatprep.subr.bf16.mxu0 0
  %188 = vmatpush1.bf16.msra.mxu0 0
  %189 = vmatprep.subr.bf16.mxu0 0
  %190 = vmatpush1.bf16.msra.mxu0 0
  %191 = vmatprep.subr.bf16.mxu0 0
  %192 = vmatpush1.bf16.msra.mxu0 0
  %193 = vmatprep.subr.bf16.mxu0 0
  %194 = vmatpush1.bf16.msra.mxu0 0
  %195 = vmatprep.subr.bf16.mxu0 0
  %196 = vmatpush1.bf16.msra.mxu0 0
  %197 = vmatprep.subr.bf16.mxu0 0
  %198 = vmatpush1.bf16.msra.mxu0 0
  %199 = vmatprep.subr.bf16.mxu0 0
  %200 = vmatpush1.bf16.msra.mxu0 0
  %201 = vmatprep.subr.bf16.mxu0 0
  %202 = vmatpush1.bf16.msra.mxu0 0
  %203 = vmatprep.subr.bf16.mxu0 0
  %204 = vmatpush1.bf16.msra.mxu0 0
  %205 = vmatprep.subr.bf16.mxu0 0
  %206 = vmatpush1.bf16.msra.mxu0 0
  %207 = vmatprep.subr.bf16.mxu0 0
  %208 = vmatpush1.bf16.msra.mxu0 0
  %209 = vmatprep.subr.bf16.mxu0 0
  %210 = vmatpush1.bf16.msra.mxu0 0
  %211 = vmatprep.subr.bf16.mxu0 0
  %212 = vmatpush1.bf16.msra.mxu0 0
  %213 = vmatprep.subr.bf16.mxu0 0
  %214 = vmatpush1.bf16.msra.mxu0 0
  %215 = vmatprep.mubr.bf16.mxu0 0
  %216 = vmatmul.mubr.bf16.gmra.mrb[0].mxu0 %v181
  %v217 = vpop.f32.mrb[0].mxu0
  %v218 = vadd.f32 0.0, %v217
  %v219 = vpop.f32.mrb[0].mxu0
  %v220 = vpop.f32.mrb[0].mxu0
  %v221 = vpop.f32.mrb[0].mxu0
  %222 = vdwg.mxu0
  %v223 = vadd.f32 %v134, %v218
  %v224 = vxor.u32 %v223, 2147483648
  %v225 = vmul.f32 %v224, 1.442695
  %v226 = vpow.pop %v225
  %v227 = vadd.f32 %v226, 1.0
  %v228 = vrcp.pop %v227
  %v229 = vmul.f32 1.0, %v228
  %v230 = vtanh.pop %v223
  %232 = vrot.lane.b32.xlu0 %v165, 32
  %v233 = vpop.permute.xlu0 %232
  %v235 = vmul.f32 %v229, %v233
  %237 = vrot.lane.b32.xlu0 %v230, 32
  %v238 = vpop.permute.xlu0 %237
  %v240 = vmul.f32 %v229, %v238
  %242 = vrot.lane.b32.xlu0 %v240, 32
  %v243 = vpop.permute.xlu0 %242
  %v245 = vadd.f32 %v235, %v243
  %v246 = vtanh.pop %v245
  %248 = vrot.lane.b32.xlu0 %v246, 32
  %v249 = vpop.permute.xlu0 %248
  %v251 = vmul.f32 %v229, %v249
  %253 = vrot.lane.b32.xlu0 %v251, 64
  %v254 = vpop.permute.xlu0 %253
  %256 = vst.msk [vmem:[#allocation2] sm:$0xff] %vm179, %v254
  %v257 = vpack.c.bf16 %v251, %v251
  %259 = vrot.lane.b32.xlu0 %v257, 64
  %v260 = vpop.permute.xlu0 %259
  %v262 = vsel %vm179, %v260, 0
  %264 = vmatprep.subr.bf16.mxu0 0
  %265 = vmatpush1.bf16.msra.mxu0 %v175
  %266 = vmatprep.subr.bf16.mxu0 0
  %267 = vmatpush1.bf16.msra.mxu0 %v176
  %268 = vmatprep.subr.bf16.mxu0 0
  %269 = vmatpush1.bf16.msra.mxu0 0
  %270 = vmatprep.subr.bf16.mxu0 0
  %271 = vmatpush1.bf16.msra.mxu0 0
  %272 = vmatprep.subr.bf16.mxu0 0
  %273 = vmatpush1.bf16.msra.mxu0 0
  %274 = vmatprep.subr.bf16.mxu0 0
  %275 = vmatpush1.bf16.msra.mxu0 0
  %276 = vmatprep.subr.bf16.mxu0 0
  %277 = vmatpush1.bf16.msra.mxu0 0
  %278 = vmatprep.subr.bf16.mxu0 0
  %279 = vmatpush1.bf16.msra.mxu0 0
  %280 = vmatprep.subr.bf16.mxu0 0
  %281 = vmatpush1.bf16.msra.mxu0 0
  %282 = vmatprep.subr.bf16.mxu0 0
  %283 = vmatpush1.bf16.msra.mxu0 0
  %284 = vmatprep.subr.bf16.mxu0 0
  %285 = vmatpush1.bf16.msra.mxu0 0
  %286 = vmatprep.subr.bf16.mxu0 0
  %287 = vmatpush1.bf16.msra.mxu0 0
  %288 = vmatprep.subr.bf16.mxu0 0
  %289 = vmatpush1.bf16.msra.mxu0 0
  %290 = vmatprep.subr.bf16.mxu0 0
  %291 = vmatpush1.bf16.msra.mxu0 0
  %292 = vmatprep.subr.bf16.mxu0 0
  %293 = vmatpush1.bf16.msra.mxu0 0
  %294 = vmatprep.subr.bf16.mxu0 0
  %295 = vmatpush1.bf16.msra.mxu0 0
  %296 = vmatprep.mubr.bf16.mxu0 0
  %297 = vmatmul.mubr.bf16.gmra.mrb[0].mxu0 %v262
  %v298 = vpop.f32.mrb[0].mxu0
  %v299 = vadd.f32 0.0, %v298
  %v300 = vpop.f32.mrb[0].mxu0
  %v301 = vpop.f32.mrb[0].mxu0
  %v302 = vpop.f32.mrb[0].mxu0
  %303 = vdwg.mxu0
  %v304 = vadd.f32 %v137, %v299
  %v305 = vxor.u32 %v304, 2147483648
  %v306 = vmul.f32 %v305, 1.442695
  %v307 = vpow.pop %v306
  %v308 = vadd.f32 %v307, 1.0
  %v309 = vrcp.pop %v308
  %v310 = vmul.f32 1.0, %v309
  %v311 = vtanh.pop %v304
  %v312 = vmul.f32 %v310, %v245
  %314 = vrot.lane.b32.xlu0 %v311, 32
  %v315 = vpop.permute.xlu0 %314
  %v317 = vmul.f32 %v310, %v315
  %319 = vrot.lane.b32.xlu0 %v317, 32
  %v320 = vpop.permute.xlu0 %319
  %v322 = vadd.f32 %v312, %v320
  %v323 = vtanh.pop %v322
  %325 = vrot.lane.b32.xlu0 %v323, 32
  %v326 = vpop.permute.xlu0 %325
  %v328 = vmul.f32 %v310, %v326
  %330 = vrot.lane.b32.xlu0 %v328, 64
  %v331 = vpop.permute.xlu0 %330
  %333 = vst.msk [vmem:[#allocation2 + $0x8] sm:$0xff] %vm179, %v331
  %v334 = vpack.c.bf16 %v328, %v328
  %336 = vrot.lane.b32.xlu0 %v334, 64
  %v337 = vpop.permute.xlu0 %336
  %v339 = vsel %vm179, %v337, 0
  %341 = vmatprep.subr.bf16.mxu0 0
  %342 = vmatpush1.bf16.msra.mxu0 %v175
  %343 = vmatprep.subr.bf16.mxu0 0
  %344 = vmatpush1.bf16.msra.mxu0 %v176
  %345 = vmatprep.subr.bf16.mxu0 0
  %346 = vmatpush1.bf16.msra.mxu0 0
  %347 = vmatprep.subr.bf16.mxu0 0
  %348 = vmatpush1.bf16.msra.mxu0 0
  %349 = vmatprep.subr.bf16.mxu0 0
  %350 = vmatpush1.bf16.msra.mxu0 0
  %351 = vmatprep.subr.bf16.mxu0 0
  %352 = vmatpush1.bf16.msra.mxu0 0
  %353 = vmatprep.subr.bf16.mxu0 0
  %354 = vmatpush1.bf16.msra.mxu0 0
  %355 = vmatprep.subr.bf16.mxu0 0
  %356 = vmatpush1.bf16.msra.mxu0 0
  %357 = vmatprep.subr.bf16.mxu0 0
  %358 = vmatpush1.bf16.msra.mxu0 0
  %359 = vmatprep.subr.bf16.mxu0 0
  %360 = vmatpush1.bf16.msra.mxu0 0
  %361 = vmatprep.subr.bf16.mxu0 0
  %362 = vmatpush1.bf16.msra.mxu0 0
  %363 = vmatprep.subr.bf16.mxu0 0
  %364 = vmatpush1.bf16.msra.mxu0 0
  %365 = vmatprep.subr.bf16.mxu0 0
  %366 = vmatpush1.bf16.msra.mxu0 0
  %367 = vmatprep.subr.bf16.mxu0 0
  %368 = vmatpush1.bf16.msra.mxu0 0
  %369 = vmatprep.subr.bf16.mxu0 0
  %370 = vmatpush1.bf16.msra.mxu0 0
  %371 = vmatprep.subr.bf16.mxu0 0
  %372 = vmatpush1.bf16.msra.mxu0 0
  %373 = vmatprep.mubr.bf16.mxu0 0
  %374 = vmatmul.mubr.bf16.gmra.mrb[0].mxu0 %v339
  %v375 = vpop.f32.mrb[0].mxu0
  %v376 = vadd.f32 0.0, %v375
  %v377 = vpop.f32.mrb[0].mxu0
  %v378 = vpop.f32.mrb[0].mxu0
  %v379 = vpop.f32.mrb[0].mxu0
  %380 = vdwg.mxu0
  %v381 = vadd.f32 %v142, %v376
  %v382 = vxor.u32 %v381, 2147483648
  %v383 = vmul.f32 %v382, 1.442695
  %v384 = vpow.pop %v383
  %v385 = vadd.f32 %v384, 1.0
  %v386 = vrcp.pop %v385
  %v387 = vmul.f32 1.0, %v386
  %v388 = vtanh.pop %v381
  %v389 = vmul.f32 %v387, %v322
  %391 = vrot.lane.b32.xlu0 %v388, 32
  %v392 = vpop.permute.xlu0 %391
  %v394 = vmul.f32 %v387, %v392
  %396 = vrot.lane.b32.xlu0 %v394, 32
  %v397 = vpop.permute.xlu0 %396
  %v399 = vadd.f32 %v389, %v397
  %v400 = vtanh.pop %v399
  %402 = vrot.lane.b32.xlu0 %v400, 32
  %v403 = vpop.permute.xlu0 %402
  %v405 = vmul.f32 %v387, %v403
  %407 = vrot.lane.b32.xlu0 %v405, 64
  %v408 = vpop.permute.xlu0 %407
  %410 = vst.msk [vmem:[#allocation2 + $0x10] sm:$0xff] %vm179, %v408
  %v411 = vpack.c.bf16 %v405, %v405
  %413 = vrot.lane.b32.xlu0 %v411, 64
  %v414 = vpop.permute.xlu0 %413
  %v416 = vsel %vm179, %v414, 0
  %418 = vmatprep.subr.bf16.mxu0 0
  %419 = vmatpush1.bf16.msra.mxu0 %v175
  %420 = vmatprep.subr.bf16.mxu0 0
  %421 = vmatpush1.bf16.msra.mxu0 %v176
  %422 = vmatprep.subr.bf16.mxu0 0
  %423 = vmatpush1.bf16.msra.mxu0 0
  %424 = vmatprep.subr.bf16.mxu0 0
  %425 = vmatpush1.bf16.msra.mxu0 0
  %426 = vmatprep.subr.bf16.mxu0 0
  %427 = vmatpush1.bf16.msra.mxu0 0
  %428 = vmatprep.subr.bf16.mxu0 0
  %429 = vmatpush1.bf16.msra.mxu0 0
  %430 = vmatprep.subr.bf16.mxu0 0
  %431 = vmatpush1.bf16.msra.mxu0 0
  %432 = vmatprep.subr.bf16.mxu0 0
  %433 = vmatpush1.bf16.msra.mxu0 0
  %434 = vmatprep.subr.bf16.mxu0 0
  %435 = vmatpush1.bf16.msra.mxu0 0
  %436 = vmatprep.subr.bf16.mxu0 0
  %437 = vmatpush1.bf16.msra.mxu0 0
  %438 = vmatprep.subr.bf16.mxu0 0
  %439 = vmatpush1.bf16.msra.mxu0 0
  %440 = vmatprep.subr.bf16.mxu0 0
  %441 = vmatpush1.bf16.msra.mxu0 0
  %442 = vmatprep.subr.bf16.mxu0 0
  %443 = vmatpush1.bf16.msra.mxu0 0
  %444 = vmatprep.subr.bf16.mxu0 0
  %445 = vmatpush1.bf16.msra.mxu0 0
  %446 = vmatprep.subr.bf16.mxu0 0
  %447 = vmatpush1.bf16.msra.mxu0 0
  %448 = vmatprep.subr.bf16.mxu0 0
  %449 = vmatpush1.bf16.msra.mxu0 0
  %450 = vmatprep.mubr.bf16.mxu0 0
  %451 = vmatmul.mubr.bf16.gmra.mrb[0].mxu0 %v416
  %v452 = vpop.f32.mrb[0].mxu0
  %v453 = vadd.f32 0.0, %v452
  %v454 = vpop.f32.mrb[0].mxu0
  %v455 = vpop.f32.mrb[0].mxu0
  %v456 = vpop.f32.mrb[0].mxu0
  %457 = vdwg.mxu0
  %v458 = vadd.f32 %v145, %v453
  %v459 = vxor.u32 %v458, 2147483648
  %v460 = vmul.f32 %v459, 1.442695
  %v461 = vpow.pop %v460
  %v462 = vadd.f32 %v461, 1.0
  %v463 = vrcp.pop %v462
  %v464 = vmul.f32 1.0, %v463
  %v465 = vtanh.pop %v458
  %v466 = vmul.f32 %v464, %v399
  %468 = vrot.lane.b32.xlu0 %v465, 32
  %v469 = vpop.permute.xlu0 %468
  %v471 = vmul.f32 %v464, %v469
  %473 = vrot.lane.b32.xlu0 %v471, 32
  %v474 = vpop.permute.xlu0 %473
  %v476 = vadd.f32 %v466, %v474
  %v477 = vtanh.pop %v476
  %479 = vrot.lane.b32.xlu0 %v477, 32
  %v480 = vpop.permute.xlu0 %479
  %v482 = vmul.f32 %v464, %v480
  %484 = vrot.lane.b32.xlu0 %v482, 64
  %v485 = vpop.permute.xlu0 %484
  %487 = vst.msk [vmem:[#allocation2 + $0x18] sm:$0xff] %vm179, %v485
  %v488 = vpack.c.bf16 %v482, %v482
  %490 = vrot.lane.b32.xlu0 %v488, 64
  %v491 = vpop.permute.xlu0 %490
  %v493 = vsel %vm179, %v491, 0
  %495 = vmatprep.subr.bf16.mxu0 0
  %496 = vmatpush1.bf16.msra.mxu0 %v175
  %497 = vmatprep.subr.bf16.mxu0 0
  %498 = vmatpush1.bf16.msra.mxu0 %v176
  %499 = vmatprep.subr.bf16.mxu0 0
  %500 = vmatpush1.bf16.msra.mxu0 0
  %501 = vmatprep.subr.bf16.mxu0 0
  %502 = vmatpush1.bf16.msra.mxu0 0
  %503 = vmatprep.subr.bf16.mxu0 0
  %504 = vmatpush1.bf16.msra.mxu0 0
  %505 = vmatprep.subr.bf16.mxu0 0
  %506 = vmatpush1.bf16.msra.mxu0 0
  %507 = vmatprep.subr.bf16.mxu0 0
  %508 = vmatpush1.bf16.msra.mxu0 0
  %509 = vmatprep.subr.bf16.mxu0 0
  %510 = vmatpush1.bf16.msra.mxu0 0
  %511 = vmatprep.subr.bf16.mxu0 0
  %512 = vmatpush1.bf16.msra.mxu0 0
  %513 = vmatprep.subr.bf16.mxu0 0
  %514 = vmatpush1.bf16.msra.mxu0 0
  %515 = vmatprep.subr.bf16.mxu0 0
  %516 = vmatpush1.bf16.msra.mxu0 0
  %517 = vmatprep.subr.bf16.mxu0 0
  %518 = vmatpush1.bf16.msra.mxu0 0
  %519 = vmatprep.subr.bf16.mxu0 0
  %520 = vmatpush1.bf16.msra.mxu0 0
  %521 = vmatprep.subr.bf16.mxu0 0
  %522 = vmatpush1.bf16.msra.mxu0 0
  %523 = vmatprep.subr.bf16.mxu0 0
  %524 = vmatpush1.bf16.msra.mxu0 0
  %525 = vmatprep.subr.bf16.mxu0 0
  %526 = vmatpush1.bf16.msra.mxu0 0
  %527 = vmatprep.mubr.bf16.mxu0 0
  %528 = vmatmul.mubr.bf16.gmra.mrb[0].mxu0 %v493
  %v529 = vpop.f32.mrb[0].mxu0
  %v530 = vadd.f32 0.0, %v529
  %v531 = vpop.f32.mrb[0].mxu0
  %v532 = vpop.f32.mrb[0].mxu0
  %v533 = vpop.f32.mrb[0].mxu0
  %534 = vdwg.mxu0
  %v535 = vadd.f32 %v150, %v530
  %v536 = vxor.u32 %v535, 2147483648
  %v537 = vmul.f32 %v536, 1.442695
  %v538 = vpow.pop %v537
  %v539 = vadd.f32 %v538, 1.0
  %v540 = vrcp.pop %v539
  %v541 = vmul.f32 1.0, %v540
  %v542 = vtanh.pop %v535
  %v543 = vmul.f32 %v541, %v476
  %545 = vrot.lane.b32.xlu0 %v542, 32
  %v546 = vpop.permute.xlu0 %545
  %v548 = vmul.f32 %v541, %v546
  %550 = vrot.lane.b32.xlu0 %v548, 32
  %v551 = vpop.permute.xlu0 %550
  %v553 = vadd.f32 %v543, %v551
  %v554 = vtanh.pop %v553
  %556 = vrot.lane.b32.xlu0 %v554, 32
  %v557 = vpop.permute.xlu0 %556
  %v559 = vmul.f32 %v541, %v557
  %561 = vrot.lane.b32.xlu0 %v559, 64
  %v562 = vpop.permute.xlu0 %561
  %564 = vst.msk [vmem:[#allocation2 + $0x20] sm:$0xff] %vm179, %v562
  %v565 = vpack.c.bf16 %v559, %v559
  %567 = vrot.lane.b32.xlu0 %v565, 64
  %v568 = vpop.permute.xlu0 %567
  %v570 = vsel %vm179, %v568, 0
  %572 = vmatprep.subr.bf16.mxu0 0
  %573 = vmatpush1.bf16.msra.mxu0 %v175
  %574 = vmatprep.subr.bf16.mxu0 0
  %575 = vmatpush1.bf16.msra.mxu0 %v176
  %576 = vmatprep.subr.bf16.mxu0 0
  %577 = vmatpush1.bf16.msra.mxu0 0
  %578 = vmatprep.subr.bf16.mxu0 0
  %579 = vmatpush1.bf16.msra.mxu0 0
  %580 = vmatprep.subr.bf16.mxu0 0
  %581 = vmatpush1.bf16.msra.mxu0 0
  %582 = vmatprep.subr.bf16.mxu0 0
  %583 = vmatpush1.bf16.msra.mxu0 0
  %584 = vmatprep.subr.bf16.mxu0 0
  %585 = vmatpush1.bf16.msra.mxu0 0
  %586 = vmatprep.subr.bf16.mxu0 0
  %587 = vmatpush1.bf16.msra.mxu0 0
  %588 = vmatprep.subr.bf16.mxu0 0
  %589 = vmatpush1.bf16.msra.mxu0 0
  %590 = vmatprep.subr.bf16.mxu0 0
  %591 = vmatpush1.bf16.msra.mxu0 0
  %592 = vmatprep.subr.bf16.mxu0 0
  %593 = vmatpush1.bf16.msra.mxu0 0
  %594 = vmatprep.subr.bf16.mxu0 0
  %595 = vmatpush1.bf16.msra.mxu0 0
  %596 = vmatprep.subr.bf16.mxu0 0
  %597 = vmatpush1.bf16.msra.mxu0 0
  %598 = vmatprep.subr.bf16.mxu0 0
  %599 = vmatpush1.bf16.msra.mxu0 0
  %600 = vmatprep.subr.bf16.mxu0 0
  %601 = vmatpush1.bf16.msra.mxu0 0
  %602 = vmatprep.subr.bf16.mxu0 0
  %603 = vmatpush1.bf16.msra.mxu0 0
  %604 = vmatprep.mubr.bf16.mxu0 0
  %605 = vmatmul.mubr.bf16.gmra.mrb[0].mxu0 %v570
  %v606 = vpop.f32.mrb[0].mxu0
  %v607 = vadd.f32 0.0, %v606
  %v608 = vpop.f32.mrb[0].mxu0
  %v609 = vpop.f32.mrb[0].mxu0
  %v610 = vpop.f32.mrb[0].mxu0
  %611 = vdwg.mxu0
  %v612 = vadd.f32 %v153, %v607
  %v613 = vxor.u32 %v612, 2147483648
  %v614 = vmul.f32 %v613, 1.442695
  %v615 = vpow.pop %v614
  %v616 = vadd.f32 %v615, 1.0
  %v617 = vrcp.pop %v616
  %v618 = vmul.f32 1.0, %v617
  %v619 = vtanh.pop %v612
  %v620 = vmul.f32 %v618, %v553
  %622 = vrot.lane.b32.xlu0 %v619, 32
  %v623 = vpop.permute.xlu0 %622
  %v625 = vmul.f32 %v618, %v623
  %627 = vrot.lane.b32.xlu0 %v625, 32
  %v628 = vpop.permute.xlu0 %627
  %v630 = vadd.f32 %v620, %v628
  %v631 = vtanh.pop %v630
  %633 = vrot.lane.b32.xlu0 %v631, 32
  %v634 = vpop.permute.xlu0 %633
  %v636 = vmul.f32 %v618, %v634
  %638 = vrot.lane.b32.xlu0 %v636, 64
  %v639 = vpop.permute.xlu0 %638
  %641 = vst.msk [vmem:[#allocation2 + $0x28] sm:$0xff] %vm179, %v639
  %v642 = vpack.c.bf16 %v636, %v636
  %644 = vrot.lane.b32.xlu0 %v642, 64
  %v645 = vpop.permute.xlu0 %644
  %v647 = vsel %vm179, %v645, 0
  %649 = vmatprep.subr.bf16.mxu0 0
  %650 = vmatpush1.bf16.msra.mxu0 %v175
  %651 = vmatprep.subr.bf16.mxu0 0
  %652 = vmatpush1.bf16.msra.mxu0 %v176
  %653 = vmatprep.subr.bf16.mxu0 0
  %654 = vmatpush1.bf16.msra.mxu0 0
  %655 = vmatprep.subr.bf16.mxu0 0
  %656 = vmatpush1.bf16.msra.mxu0 0
  %657 = vmatprep.subr.bf16.mxu0 0
  %658 = vmatpush1.bf16.msra.mxu0 0
  %659 = vmatprep.subr.bf16.mxu0 0
  %660 = vmatpush1.bf16.msra.mxu0 0
  %661 = vmatprep.subr.bf16.mxu0 0
  %662 = vmatpush1.bf16.msra.mxu0 0
  %663 = vmatprep.subr.bf16.mxu0 0
  %664 = vmatpush1.bf16.msra.mxu0 0
  %665 = vmatprep.subr.bf16.mxu0 0
  %666 = vmatpush1.bf16.msra.mxu0 0
  %667 = vmatprep.subr.bf16.mxu0 0
  %668 = vmatpush1.bf16.msra.mxu0 0
  %669 = vmatprep.subr.bf16.mxu0 0
  %670 = vmatpush1.bf16.msra.mxu0 0
  %671 = vmatprep.subr.bf16.mxu0 0
  %672 = vmatpush1.bf16.msra.mxu0 0
  %673 = vmatprep.subr.bf16.mxu0 0
  %674 = vmatpush1.bf16.msra.mxu0 0
  %675 = vmatprep.subr.bf16.mxu0 0
  %676 = vmatpush1.bf16.msra.mxu0 0
  %677 = vmatprep.subr.bf16.mxu0 0
  %678 = vmatpush1.bf16.msra.mxu0 0
  %679 = vmatprep.subr.bf16.mxu0 0
  %680 = vmatpush1.bf16.msra.mxu0 0
  %681 = vmatprep.mubr.bf16.mxu0 0
  %682 = vmatmul.mubr.bf16.gmra.mrb[0].mxu0 %v647
  %v683 = vpop.f32.mrb[0].mxu0
  %v684 = vadd.f32 0.0, %v683
  %v685 = vpop.f32.mrb[0].mxu0
  %v686 = vpop.f32.mrb[0].mxu0
  %v687 = vpop.f32.mrb[0].mxu0
  %688 = vdwg.mxu0
  %v689 = vadd.f32 %v158, %v684
  %v690 = vxor.u32 %v689, 2147483648
  %v691 = vmul.f32 %v690, 1.442695
  %v692 = vpow.pop %v691
  %v693 = vadd.f32 %v692, 1.0
  %v694 = vrcp.pop %v693
  %v695 = vmul.f32 1.0, %v694
  %v696 = vtanh.pop %v689
  %v697 = vmul.f32 %v695, %v630
  %699 = vrot.lane.b32.xlu0 %v696, 32
  %v700 = vpop.permute.xlu0 %699
  %v702 = vmul.f32 %v695, %v700
  %704 = vrot.lane.b32.xlu0 %v702, 32
  %v705 = vpop.permute.xlu0 %704
  %v707 = vadd.f32 %v697, %v705
  %v708 = vtanh.pop %v707
  %710 = vrot.lane.b32.xlu0 %v708, 32
  %v711 = vpop.permute.xlu0 %710
  %v713 = vmul.f32 %v695, %v711
  %715 = vrot.lane.b32.xlu0 %v713, 64
  %v716 = vpop.permute.xlu0 %715
  %718 = vst.msk [vmem:[#allocation2 + $0x30] sm:$0xff] %vm179, %v716
  %v719 = vpack.c.bf16 %v713, %v713
  %721 = vrot.lane.b32.xlu0 %v719, 64
  %v722 = vpop.permute.xlu0 %721
  %v724 = vsel %vm179, %v722, 0
  %726 = vmatprep.subr.bf16.mxu0 0
  %727 = vmatpush1.bf16.msra.mxu0 %v175
  %728 = vmatprep.subr.bf16.mxu0 0
  %729 = vmatpush1.bf16.msra.mxu0 %v176
  %730 = vmatprep.subr.bf16.mxu0 0
  %731 = vmatpush1.bf16.msra.mxu0 0
  %732 = vmatprep.subr.bf16.mxu0 0
  %733 = vmatpush1.bf16.msra.mxu0 0
  %734 = vmatprep.subr.bf16.mxu0 0
  %735 = vmatpush1.bf16.msra.mxu0 0
  %736 = vmatprep.subr.bf16.mxu0 0
  %737 = vmatpush1.bf16.msra.mxu0 0
  %738 = vmatprep.subr.bf16.mxu0 0
  %739 = vmatpush1.bf16.msra.mxu0 0
  %740 = vmatprep.subr.bf16.mxu0 0
  %741 = vmatpush1.bf16.msra.mxu0 0
  %742 = vmatprep.subr.bf16.mxu0 0
  %743 = vmatpush1.bf16.msra.mxu0 0
  %744 = vmatprep.subr.bf16.mxu0 0
  %745 = vmatpush1.bf16.msra.mxu0 0
  %746 = vmatprep.subr.bf16.mxu0 0
  %747 = vmatpush1.bf16.msra.mxu0 0
  %748 = vmatprep.subr.bf16.mxu0 0
  %749 = vmatpush1.bf16.msra.mxu0 0
  %750 = vmatprep.subr.bf16.mxu0 0
  %751 = vmatpush1.bf16.msra.mxu0 0
  %752 = vmatprep.subr.bf16.mxu0 0
  %753 = vmatpush1.bf16.msra.mxu0 0
  %754 = vmatprep.subr.bf16.mxu0 0
  %755 = vmatpush1.bf16.msra.mxu0 0
  %756 = vmatprep.subr.bf16.mxu0 0
  %757 = vmatpush1.bf16.msra.mxu0 0
  %758 = vmatprep.mubr.bf16.mxu0 0
  %759 = vmatmul.mubr.bf16.gmra.mrb[0].mxu0 %v724
  %v760 = vpop.f32.mrb[0].mxu0
  %v761 = vadd.f32 0.0, %v760
  %v762 = vpop.f32.mrb[0].mxu0
  %v763 = vpop.f32.mrb[0].mxu0
  %v764 = vpop.f32.mrb[0].mxu0
  %765 = vdwg.mxu0
  %v766 = vadd.f32 %v161, %v761
  %v767 = vxor.u32 %v766, 2147483648
  %v768 = vmul.f32 %v767, 1.442695
  %v769 = vpow.pop %v768
  %v770 = vadd.f32 %v769, 1.0
  %v771 = vrcp.pop %v770
  %v772 = vmul.f32 1.0, %v771
  %v773 = vtanh.pop %v766
  %v774 = vmul.f32 %v772, %v707
  %776 = vrot.lane.b32.xlu0 %v773, 32
  %v777 = vpop.permute.xlu0 %776
  %v779 = vmul.f32 %v772, %v777
  %781 = vrot.lane.b32.xlu0 %v779, 32
  %v782 = vpop.permute.xlu0 %781
  %v784 = vadd.f32 %v774, %v782
  %v785 = vtanh.pop %v784
  %787 = vrot.lane.b32.xlu0 %v785, 32
  %v788 = vpop.permute.xlu0 %787
  %v790 = vmul.f32 %v772, %v788
  %792 = vrot.lane.b32.xlu0 %v790, 64
  %v793 = vpop.permute.xlu0 %792
  %795 = vst.msk [vmem:[#allocation2 + $0x38] sm:$0xff] %vm179, %v793
  %796 = vst.msk [vmem:[%s12] sm:$0xff] %vm179, %v793
  %798 = vrot.lane.b32.xlu0 %v784, 96
  %v799 = vpop.permute.xlu0 %798
  %801 = vst.msk [vmem:[%s13] sm:$0xff] %vm179, %v799
  %v802 = vld [vmem:[%s7] sm:$0xf]
  %v803 = vld [vmem:[%s7 + $0x4] sm:$0xf]
  %v804 = vld [vmem:[%s7 + $0x8] sm:$0xf]
  %v805 = vld [vmem:[%s7 + $0xc] sm:$0xf]
  %v806 = vld [vmem:[#allocation2] sm:$0xff]
  %v807 = vld [vmem:[#allocation2 + $0x8] sm:$0xff]
  %v808 = vld [vmem:[#allocation2 + $0x10] sm:$0xff]
  %v809 = vld [vmem:[#allocation2 + $0x18] sm:$0xff]
  %v810 = vld [vmem:[#allocation2 + $0x20] sm:$0xff]
  %v811 = vld [vmem:[#allocation2 + $0x28] sm:$0xff]
  %v812 = vld [vmem:[#allocation2 + $0x30] sm:$0xff]
  %v813 = vld [vmem:[#allocation2 + $0x38] sm:$0xff]
  %v814 = vpack.c.bf16 %v807, %v806
  %v815 = vpack.c.bf16 %v809, %v808
  %v816 = vpack.c.bf16 %v811, %v810
  %v817 = vpack.c.bf16 %v813, %v812
  %v818 = vld [vmem:[%s6] sm:$0xf]
  %v819 = vld [vmem:[%s6 + $0x4] sm:$0xf]
  %v820 = vld [vmem:[%s6 + $0x8] sm:$0xf]
  %v821 = vld [vmem:[%s6 + $0xc] sm:$0xf]
  %v822 = vld [vmem:[%s8] sm:$0x1]
  %v824 = vlaneseq
  %v825 = vshrl.u32 %v824, 7
  %v826 = vsub.s32 0, %v825
  %v827 = vrot.slane %v822, %v826
  %v833 = vunpack.c.l.b16 %v818
  %v834 = vunpack.c.l.b16 %v819
  %v835 = vunpack.c.l.b16 %v820
  %v836 = vunpack.c.l.b16 %v821
  %v837 = vpack.c.b16 %v834, %v833
  %v838 = vpack.c.b16 %v836, %v835
  %v842 = vsel %vm179, %v814, 0
  %v845 = vsel %vm179, %v815, 0
  %v848 = vsel %vm179, %v816, 0
  %v851 = vsel %vm179, %v817, 0
  %853 = vmatprep.subr.bf16.mxu0 0
  %854 = vmatpush1.bf16.msra.mxu0 %v837
  %855 = vmatprep.subr.bf16.mxu0 0
  %856 = vmatpush1.bf16.msra.mxu0 %v838
  %857 = vmatprep.subr.bf16.mxu0 0
  %858 = vmatpush1.bf16.msra.mxu0 0
  %859 = vmatprep.subr.bf16.mxu0 0
  %860 = vmatpush1.bf16.msra.mxu0 0
  %861 = vmatprep.subr.bf16.mxu0 0
  %862 = vmatpush1.bf16.msra.mxu0 0
  %863 = vmatprep.subr.bf16.mxu0 0
  %864 = vmatpush1.bf16.msra.mxu0 0
  %865 = vmatprep.subr.bf16.mxu0 0
  %866 = vmatpush1.bf16.msra.mxu0 0
  %867 = vmatprep.subr.bf16.mxu0 0
  %868 = vmatpush1.bf16.msra.mxu0 0
  %869 = vmatprep.subr.bf16.mxu0 0
  %870 = vmatpush1.bf16.msra.mxu0 0
  %871 = vmatprep.subr.bf16.mxu0 0
  %872 = vmatpush1.bf16.msra.mxu0 0
  %873 = vmatprep.subr.bf16.mxu0 0
  %874 = vmatpush1.bf16.msra.mxu0 0
  %875 = vmatprep.subr.bf16.mxu0 0
  %876 = vmatpush1.bf16.msra.mxu0 0
  %877 = vmatprep.subr.bf16.mxu0 0
  %878 = vmatpush1.bf16.msra.mxu0 0
  %879 = vmatprep.subr.bf16.mxu0 0
  %880 = vmatpush1.bf16.msra.mxu0 0
  %881 = vmatprep.subr.bf16.mxu0 0
  %882 = vmatpush1.bf16.msra.mxu0 0
  %883 = vmatprep.subr.bf16.mxu0 0
  %884 = vmatpush1.bf16.msra.mxu0 0
  %885 = vmatprep.mubr.bf16.mxu0 0
  %886 = vmatmul.mubr.bf16.gmra.mrb[0].mxu0 %v842
  %v887 = vpop.f32.mrb[0].mxu0
  %v888 = vadd.f32 %v827, %v887
  %v889 = vpop.f32.mrb[0].mxu0
  %v890 = vpop.f32.mrb[0].mxu0
  %v891 = vadd.f32 %v827, %v890
  %v892 = vpop.f32.mrb[0].mxu0
  %893 = vmatprep.mubr.bf16.mxu0 0
  %894 = vmatmul.mubr.bf16.gmra.mrb[0].mxu0 %v845
  %v895 = vpop.f32.mrb[0].mxu0
  %v896 = vadd.f32 %v827, %v895
  %v897 = vpop.f32.mrb[0].mxu0
  %v898 = vpop.f32.mrb[0].mxu0
  %v899 = vadd.f32 %v827, %v898
  %v900 = vpop.f32.mrb[0].mxu0
  %901 = vmatprep.mubr.bf16.mxu0 0
  %902 = vmatmul.mubr.bf16.gmra.mrb[0].mxu0 %v848
  %v903 = vpop.f32.mrb[0].mxu0
  %v904 = vadd.f32 %v827, %v903
  %v905 = vpop.f32.mrb[0].mxu0
  %v906 = vpop.f32.mrb[0].mxu0
  %v907 = vadd.f32 %v827, %v906
  %v908 = vpop.f32.mrb[0].mxu0
  %909 = vmatprep.mubr.bf16.mxu0 0
  %910 = vmatmul.mubr.bf16.gmra.mrb[0].mxu0 %v851
  %v911 = vpop.f32.mrb[0].mxu0
  %v912 = vadd.f32 %v827, %v911
  %v913 = vpop.f32.mrb[0].mxu0
  %v914 = vpop.f32.mrb[0].mxu0
  %v915 = vadd.f32 %v827, %v914
  %v916 = vpop.f32.mrb[0].mxu0
  %917 = vdwg.mxu0
  %s918 = scalar_lea.vmem %s1, 8
  %v919 = vld [vmem:[%s918] sm:$0xff]
  %s920 = scalar_lea.vmem %s2, 8
  %v921 = vld [vmem:[%s920] sm:$0xff]
  %v922 = vpack.c.bf16 %v919, %v919
  %v927 = vunpack.c.l.b16 %v802
  %v928 = vunpack.c.l.b16 %v803
  %v929 = vunpack.c.l.b16 %v804
  %v930 = vunpack.c.l.b16 %v805
  %v931 = vpack.c.b16 %v928, %v927
  %v932 = vpack.c.b16 %v930, %v929
  %v936 = vsel %vm179, %v922, 0
  %938 = vmatprep.subr.bf16.mxu0 0
  %939 = vmatpush1.bf16.msra.mxu0 %v931
  %940 = vmatprep.subr.bf16.mxu0 0
  %941 = vmatpush1.bf16.msra.mxu0 %v932
  %942 = vmatprep.subr.bf16.mxu0 0
  %943 = vmatpush1.bf16.msra.mxu0 0
  %944 = vmatprep.subr.bf16.mxu0 0
  %945 = vmatpush1.bf16.msra.mxu0 0
  %946 = vmatprep.subr.bf16.mxu0 0
  %947 = vmatpush1.bf16.msra.mxu0 0
  %948 = vmatprep.subr.bf16.mxu0 0
  %949 = vmatpush1.bf16.msra.mxu0 0
  %950 = vmatprep.subr.bf16.mxu0 0
  %951 = vmatpush1.bf16.msra.mxu0 0
  %952 = vmatprep.subr.bf16.mxu0 0
  %953 = vmatpush1.bf16.msra.mxu0 0
  %954 = vmatprep.subr.bf16.mxu0 0
  %955 = vmatpush1.bf16.msra.mxu0 0
  %956 = vmatprep.subr.bf16.mxu0 0
  %957 = vmatpush1.bf16.msra.mxu0 0
  %958 = vmatprep.subr.bf16.mxu0 0
  %959 = vmatpush1.bf16.msra.mxu0 0
  %960 = vmatprep.subr.bf16.mxu0 0
  %961 = vmatpush1.bf16.msra.mxu0 0
  %962 = vmatprep.subr.bf16.mxu0 0
  %963 = vmatpush1.bf16.msra.mxu0 0
  %964 = vmatprep.subr.bf16.mxu0 0
  %965 = vmatpush1.bf16.msra.mxu0 0
  %966 = vmatprep.subr.bf16.mxu0 0
  %967 = vmatpush1.bf16.msra.mxu0 0
  %968 = vmatprep.subr.bf16.mxu0 0
  %969 = vmatpush1.bf16.msra.mxu0 0
  %970 = vmatprep.mubr.bf16.mxu0 0
  %971 = vmatmul.mubr.bf16.gmra.mrb[0].mxu0 %v936
  %v972 = vpop.f32.mrb[0].mxu0
  %v973 = vadd.f32 0.0, %v972
  %v974 = vpop.f32.mrb[0].mxu0
  %v975 = vpop.f32.mrb[0].mxu0
  %v976 = vpop.f32.mrb[0].mxu0
  %977 = vdwg.mxu0
  %v978 = vadd.f32 %v888, %v973
  %v979 = vxor.u32 %v978, 2147483648
  %v980 = vmul.f32 %v979, 1.442695
  %v981 = vpow.pop %v980
  %v982 = vadd.f32 %v981, 1.0
  %v983 = vrcp.pop %v982
  %v984 = vmul.f32 1.0, %v983
  %v985 = vtanh.pop %v978
  %987 = vrot.lane.b32.xlu0 %v921, 32
  %v988 = vpop.permute.xlu0 %987
  %v990 = vmul.f32 %v984, %v988
  %992 = vrot.lane.b32.xlu0 %v985, 32
  %v993 = vpop.permute.xlu0 %992
  %v995 = vmul.f32 %v984, %v993
  %997 = vrot.lane.b32.xlu0 %v995, 32
  %v998 = vpop.permute.xlu0 %997
  %v1000 = vadd.f32 %v990, %v998
  %v1001 = vtanh.pop %v1000
  %1003 = vrot.lane.b32.xlu0 %v1001, 32
  %v1004 = vpop.permute.xlu0 %1003
  %v1006 = vmul.f32 %v984, %v1004
  %1008 = vrot.lane.b32.xlu0 %v1006, 64
  %v1009 = vpop.permute.xlu0 %1008
  %1011 = vst.msk [vmem:[#allocation2] sm:$0xff] %vm179, %v1009
  %v1012 = vpack.c.bf16 %v1006, %v1006
  %1014 = vrot.lane.b32.xlu0 %v1012, 64
  %v1015 = vpop.permute.xlu0 %1014
  %v1017 = vsel %vm179, %v1015, 0
  %1019 = vmatprep.subr.bf16.mxu0 0
  %1020 = vmatpush1.bf16.msra.mxu0 %v931
  %1021 = vmatprep.subr.bf16.mxu0 0
  %1022 = vmatpush1.bf16.msra.mxu0 %v932
  %1023 = vmatprep.subr.bf16.mxu0 0
  %1024 = vmatpush1.bf16.msra.mxu0 0
  %1025 = vmatprep.subr.bf16.mxu0 0
  %1026 = vmatpush1.bf16.msra.mxu0 0
  %1027 = vmatprep.subr.bf16.mxu0 0
  %1028 = vmatpush1.bf16.msra.mxu0 0
  %1029 = vmatprep.subr.bf16.mxu0 0
  %1030 = vmatpush1.bf16.msra.mxu0 0
  %1031 = vmatprep.subr.bf16.mxu0 0
  %1032 = vmatpush1.bf16.msra.mxu0 0
  %1033 = vmatprep.subr.bf16.mxu0 0
  %1034 = vmatpush1.bf16.msra.mxu0 0
  %1035 = vmatprep.subr.bf16.mxu0 0
  %1036 = vmatpush1.bf16.msra.mxu0 0
  %1037 = vmatprep.subr.bf16.mxu0 0
  %1038 = vmatpush1.bf16.msra.mxu0 0
  %1039 = vmatprep.subr.bf16.mxu0 0
  %1040 = vmatpush1.bf16.msra.mxu0 0
  %1041 = vmatprep.subr.bf16.mxu0 0
  %1042 = vmatpush1.bf16.msra.mxu0 0
  %1043 = vmatprep.subr.bf16.mxu0 0
  %1044 = vmatpush1.bf16.msra.mxu0 0
  %1045 = vmatprep.subr.bf16.mxu0 0
  %1046 = vmatpush1.bf16.msra.mxu0 0
  %1047 = vmatprep.subr.bf16.mxu0 0
  %1048 = vmatpush1.bf16.msra.mxu0 0
  %1049 = vmatprep.subr.bf16.mxu0 0
  %1050 = vmatpush1.bf16.msra.mxu0 0
  %1051 = vmatprep.mubr.bf16.mxu0 0
  %1052 = vmatmul.mubr.bf16.gmra.mrb[0].mxu0 %v1017
  %v1053 = vpop.f32.mrb[0].mxu0
  %v1054 = vadd.f32 0.0, %v1053
  %v1055 = vpop.f32.mrb[0].mxu0
  %v1056 = vpop.f32.mrb[0].mxu0
  %v1057 = vpop.f32.mrb[0].mxu0
  %1058 = vdwg.mxu0
  %v1059 = vadd.f32 %v891, %v1054
  %v1060 = vxor.u32 %v1059, 2147483648
  %v1061 = vmul.f32 %v1060, 1.442695
  %v1062 = vpow.pop %v1061
  %v1063 = vadd.f32 %v1062, 1.0
  %v1064 = vrcp.pop %v1063
  %v1065 = vmul.f32 1.0, %v1064
  %v1066 = vtanh.pop %v1059
  %v1067 = vmul.f32 %v1065, %v1000
  %1069 = vrot.lane.b32.xlu0 %v1066, 32
  %v1070 = vpop.permute.xlu0 %1069
  %v1072 = vmul.f32 %v1065, %v1070
  %1074 = vrot.lane.b32.xlu0 %v1072, 32
  %v1075 = vpop.permute.xlu0 %1074
  %v1077 = vadd.f32 %v1067, %v1075
  %v1078 = vtanh.pop %v1077
  %1080 = vrot.lane.b32.xlu0 %v1078, 32
  %v1081 = vpop.permute.xlu0 %1080
  %v1083 = vmul.f32 %v1065, %v1081
  %1085 = vrot.lane.b32.xlu0 %v1083, 64
  %v1086 = vpop.permute.xlu0 %1085
  %1088 = vst.msk [vmem:[#allocation2 + $0x8] sm:$0xff] %vm179, %v1086
  %v1089 = vpack.c.bf16 %v1083, %v1083
  %1091 = vrot.lane.b32.xlu0 %v1089, 64
  %v1092 = vpop.permute.xlu0 %1091
  %v1094 = vsel %vm179, %v1092, 0
  %1096 = vmatprep.subr.bf16.mxu0 0
  %1097 = vmatpush1.bf16.msra.mxu0 %v931
  %1098 = vmatprep.subr.bf16.mxu0 0
  %1099 = vmatpush1.bf16.msra.mxu0 %v932
  %1100 = vmatprep.subr.bf16.mxu0 0
  %1101 = vmatpush1.bf16.msra.mxu0 0
  %1102 = vmatprep.subr.bf16.mxu0 0
  %1103 = vmatpush1.bf16.msra.mxu0 0
  %1104 = vmatprep.subr.bf16.mxu0 0
  %1105 = vmatpush1.bf16.msra.mxu0 0
  %1106 = vmatprep.subr.bf16.mxu0 0
  %1107 = vmatpush1.bf16.msra.mxu0 0
  %1108 = vmatprep.subr.bf16.mxu0 0
  %1109 = vmatpush1.bf16.msra.mxu0 0
  %1110 = vmatprep.subr.bf16.mxu0 0
  %1111 = vmatpush1.bf16.msra.mxu0 0
  %1112 = vmatprep.subr.bf16.mxu0 0
  %1113 = vmatpush1.bf16.msra.mxu0 0
  %1114 = vmatprep.subr.bf16.mxu0 0
  %1115 = vmatpush1.bf16.msra.mxu0 0
  %1116 = vmatprep.subr.bf16.mxu0 0
  %1117 = vmatpush1.bf16.msra.mxu0 0
  %1118 = vmatprep.subr.bf16.mxu0 0
  %1119 = vmatpush1.bf16.msra.mxu0 0
  %1120 = vmatprep.subr.bf16.mxu0 0
  %1121 = vmatpush1.bf16.msra.mxu0 0
  %1122 = vmatprep.subr.bf16.mxu0 0
  %1123 = vmatpush1.bf16.msra.mxu0 0
  %1124 = vmatprep.subr.bf16.mxu0 0
  %1125 = vmatpush1.bf16.msra.mxu0 0
  %1126 = vmatprep.subr.bf16.mxu0 0
  %1127 = vmatpush1.bf16.msra.mxu0 0
  %1128 = vmatprep.mubr.bf16.mxu0 0
  %1129 = vmatmul.mubr.bf16.gmra.mrb[0].mxu0 %v1094
  %v1130 = vpop.f32.mrb[0].mxu0
  %v1131 = vadd.f32 0.0, %v1130
  %v1132 = vpop.f32.mrb[0].mxu0
  %v1133 = vpop.f32.mrb[0].mxu0
  %v1134 = vpop.f32.mrb[0].mxu0
  %1135 = vdwg.mxu0
  %v1136 = vadd.f32 %v896, %v1131
  %v1137 = vxor.u32 %v1136, 2147483648
  %v1138 = vmul.f32 %v1137, 1.442695
  %v1139 = vpow.pop %v1138
  %v1140 = vadd.f32 %v1139, 1.0
  %v1141 = vrcp.pop %v1140
  %v1142 = vmul.f32 1.0, %v1141
  %v1143 = vtanh.pop %v1136
  %v1144 = vmul.f32 %v1142, %v1077
  %1146 = vrot.lane.b32.xlu0 %v1143, 32
  %v1147 = vpop.permute.xlu0 %1146
  %v1149 = vmul.f32 %v1142, %v1147
  %1151 = vrot.lane.b32.xlu0 %v1149, 32
  %v1152 = vpop.permute.xlu0 %1151
  %v1154 = vadd.f32 %v1144, %v1152
  %v1155 = vtanh.pop %v1154
  %1157 = vrot.lane.b32.xlu0 %v1155, 32
  %v1158 = vpop.permute.xlu0 %1157
  %v1160 = vmul.f32 %v1142, %v1158
  %1162 = vrot.lane.b32.xlu0 %v1160, 64
  %v1163 = vpop.permute.xlu0 %1162
  %1165 = vst.msk [vmem:[#allocation2 + $0x10] sm:$0xff] %vm179, %v1163
  %v1166 = vpack.c.bf16 %v1160, %v1160
  %1168 = vrot.lane.b32.xlu0 %v1166, 64
  %v1169 = vpop.permute.xlu0 %1168
  %v1171 = vsel %vm179, %v1169, 0
  %1173 = vmatprep.subr.bf16.mxu0 0
  %1174 = vmatpush1.bf16.msra.mxu0 %v931
  %1175 = vmatprep.subr.bf16.mxu0 0
  %1176 = vmatpush1.bf16.msra.mxu0 %v932
  %1177 = vmatprep.subr.bf16.mxu0 0
  %1178 = vmatpush1.bf16.msra.mxu0 0
  %1179 = vmatprep.subr.bf16.mxu0 0
  %1180 = vmatpush1.bf16.msra.mxu0 0
  %1181 = vmatprep.subr.bf16.mxu0 0
  %1182 = vmatpush1.bf16.msra.mxu0 0
  %1183 = vmatprep.subr.bf16.mxu0 0
  %1184 = vmatpush1.bf16.msra.mxu0 0
  %1185 = vmatprep.subr.bf16.mxu0 0
  %1186 = vmatpush1.bf16.msra.mxu0 0
  %1187 = vmatprep.subr.bf16.mxu0 0
  %1188 = vmatpush1.bf16.msra.mxu0 0
  %1189 = vmatprep.subr.bf16.mxu0 0
  %1190 = vmatpush1.bf16.msra.mxu0 0
  %1191 = vmatprep.subr.bf16.mxu0 0
  %1192 = vmatpush1.bf16.msra.mxu0 0
  %1193 = vmatprep.subr.bf16.mxu0 0
  %1194 = vmatpush1.bf16.msra.mxu0 0
  %1195 = vmatprep.subr.bf16.mxu0 0
  %1196 = vmatpush1.bf16.msra.mxu0 0
  %1197 = vmatprep.subr.bf16.mxu0 0
  %1198 = vmatpush1.bf16.msra.mxu0 0
  %1199 = vmatprep.subr.bf16.mxu0 0
  %1200 = vmatpush1.bf16.msra.mxu0 0
  %1201 = vmatprep.subr.bf16.mxu0 0
  %1202 = vmatpush1.bf16.msra.mxu0 0
  %1203 = vmatprep.subr.bf16.mxu0 0
  %1204 = vmatpush1.bf16.msra.mxu0 0
  %1205 = vmatprep.mubr.bf16.mxu0 0
  %1206 = vmatmul.mubr.bf16.gmra.mrb[0].mxu0 %v1171
  %v1207 = vpop.f32.mrb[0].mxu0
  %v1208 = vadd.f32 0.0, %v1207
  %v1209 = vpop.f32.mrb[0].mxu0
  %v1210 = vpop.f32.mrb[0].mxu0
  %v1211 = vpop.f32.mrb[0].mxu0
  %1212 = vdwg.mxu0
  %v1213 = vadd.f32 %v899, %v1208
  %v1214 = vxor.u32 %v1213, 2147483648
  %v1215 = vmul.f32 %v1214, 1.442695
  %v1216 = vpow.pop %v1215
  %v1217 = vadd.f32 %v1216, 1.0
  %v1218 = vrcp.pop %v1217
  %v1219 = vmul.f32 1.0, %v1218
  %v1220 = vtanh.pop %v1213
  %v1221 = vmul.f32 %v1219, %v1154
  %1223 = vrot.lane.b32.xlu0 %v1220, 32
  %v1224 = vpop.permute.xlu0 %1223
  %v1226 = vmul.f32 %v1219, %v1224
  %1228 = vrot.lane.b32.xlu0 %v1226, 32
  %v1229 = vpop.permute.xlu0 %1228
  %v1231 = vadd.f32 %v1221, %v1229
  %v1232 = vtanh.pop %v1231
  %1234 = vrot.lane.b32.xlu0 %v1232, 32
  %v1235 = vpop.permute.xlu0 %1234
  %v1237 = vmul.f32 %v1219, %v1235
  %1239 = vrot.lane.b32.xlu0 %v1237, 64
  %v1240 = vpop.permute.xlu0 %1239
  %1242 = vst.msk [vmem:[#allocation2 + $0x18] sm:$0xff] %vm179, %v1240
  %v1243 = vpack.c.bf16 %v1237, %v1237
  %1245 = vrot.lane.b32.xlu0 %v1243, 64
  %v1246 = vpop.permute.xlu0 %1245
  %v1248 = vsel %vm179, %v1246, 0
  %1250 = vmatprep.subr.bf16.mxu0 0
  %1251 = vmatpush1.bf16.msra.mxu0 %v931
  %1252 = vmatprep.subr.bf16.mxu0 0
  %1253 = vmatpush1.bf16.msra.mxu0 %v932
  %1254 = vmatprep.subr.bf16.mxu0 0
  %1255 = vmatpush1.bf16.msra.mxu0 0
  %1256 = vmatprep.subr.bf16.mxu0 0
  %1257 = vmatpush1.bf16.msra.mxu0 0
  %1258 = vmatprep.subr.bf16.mxu0 0
  %1259 = vmatpush1.bf16.msra.mxu0 0
  %1260 = vmatprep.subr.bf16.mxu0 0
  %1261 = vmatpush1.bf16.msra.mxu0 0
  %1262 = vmatprep.subr.bf16.mxu0 0
  %1263 = vmatpush1.bf16.msra.mxu0 0
  %1264 = vmatprep.subr.bf16.mxu0 0
  %1265 = vmatpush1.bf16.msra.mxu0 0
  %1266 = vmatprep.subr.bf16.mxu0 0
  %1267 = vmatpush1.bf16.msra.mxu0 0
  %1268 = vmatprep.subr.bf16.mxu0 0
  %1269 = vmatpush1.bf16.msra.mxu0 0
  %1270 = vmatprep.subr.bf16.mxu0 0
  %1271 = vmatpush1.bf16.msra.mxu0 0
  %1272 = vmatprep.subr.bf16.mxu0 0
  %1273 = vmatpush1.bf16.msra.mxu0 0
  %1274 = vmatprep.subr.bf16.mxu0 0
  %1275 = vmatpush1.bf16.msra.mxu0 0
  %1276 = vmatprep.subr.bf16.mxu0 0
  %1277 = vmatpush1.bf16.msra.mxu0 0
  %1278 = vmatprep.subr.bf16.mxu0 0
  %1279 = vmatpush1.bf16.msra.mxu0 0
  %1280 = vmatprep.subr.bf16.mxu0 0
  %1281 = vmatpush1.bf16.msra.mxu0 0
  %1282 = vmatprep.mubr.bf16.mxu0 0
  %1283 = vmatmul.mubr.bf16.gmra.mrb[0].mxu0 %v1248
  %v1284 = vpop.f32.mrb[0].mxu0
  %v1285 = vadd.f32 0.0, %v1284
  %v1286 = vpop.f32.mrb[0].mxu0
  %v1287 = vpop.f32.mrb[0].mxu0
  %v1288 = vpop.f32.mrb[0].mxu0
  %1289 = vdwg.mxu0
  %v1290 = vadd.f32 %v904, %v1285
  %v1291 = vxor.u32 %v1290, 2147483648
  %v1292 = vmul.f32 %v1291, 1.442695
  %v1293 = vpow.pop %v1292
  %v1294 = vadd.f32 %v1293, 1.0
  %v1295 = vrcp.pop %v1294
  %v1296 = vmul.f32 1.0, %v1295
  %v1297 = vtanh.pop %v1290
  %v1298 = vmul.f32 %v1296, %v1231
  %1300 = vrot.lane.b32.xlu0 %v1297, 32
  %v1301 = vpop.permute.xlu0 %1300
  %v1303 = vmul.f32 %v1296, %v1301
  %1305 = vrot.lane.b32.xlu0 %v1303, 32
  %v1306 = vpop.permute.xlu0 %1305
  %v1308 = vadd.f32 %v1298, %v1306
  %v1309 = vtanh.pop %v1308
  %1311 = vrot.lane.b32.xlu0 %v1309, 32
  %v1312 = vpop.permute.xlu0 %1311
  %v1314 = vmul.f32 %v1296, %v1312
  %1316 = vrot.lane.b32.xlu0 %v1314, 64
  %v1317 = vpop.permute.xlu0 %1316
  %1319 = vst.msk [vmem:[#allocation2 + $0x20] sm:$0xff] %vm179, %v1317
  %v1320 = vpack.c.bf16 %v1314, %v1314
  %1322 = vrot.lane.b32.xlu0 %v1320, 64
  %v1323 = vpop.permute.xlu0 %1322
  %v1325 = vsel %vm179, %v1323, 0
  %1327 = vmatprep.subr.bf16.mxu0 0
  %1328 = vmatpush1.bf16.msra.mxu0 %v931
  %1329 = vmatprep.subr.bf16.mxu0 0
  %1330 = vmatpush1.bf16.msra.mxu0 %v932
  %1331 = vmatprep.subr.bf16.mxu0 0
  %1332 = vmatpush1.bf16.msra.mxu0 0
  %1333 = vmatprep.subr.bf16.mxu0 0
  %1334 = vmatpush1.bf16.msra.mxu0 0
  %1335 = vmatprep.subr.bf16.mxu0 0
  %1336 = vmatpush1.bf16.msra.mxu0 0
  %1337 = vmatprep.subr.bf16.mxu0 0
  %1338 = vmatpush1.bf16.msra.mxu0 0
  %1339 = vmatprep.subr.bf16.mxu0 0
  %1340 = vmatpush1.bf16.msra.mxu0 0
  %1341 = vmatprep.subr.bf16.mxu0 0
  %1342 = vmatpush1.bf16.msra.mxu0 0
  %1343 = vmatprep.subr.bf16.mxu0 0
  %1344 = vmatpush1.bf16.msra.mxu0 0
  %1345 = vmatprep.subr.bf16.mxu0 0
  %1346 = vmatpush1.bf16.msra.mxu0 0
  %1347 = vmatprep.subr.bf16.mxu0 0
  %1348 = vmatpush1.bf16.msra.mxu0 0
  %1349 = vmatprep.subr.bf16.mxu0 0
  %1350 = vmatpush1.bf16.msra.mxu0 0
  %1351 = vmatprep.subr.bf16.mxu0 0
  %1352 = vmatpush1.bf16.msra.mxu0 0
  %1353 = vmatprep.subr.bf16.mxu0 0
  %1354 = vmatpush1.bf16.msra.mxu0 0
  %1355 = vmatprep.subr.bf16.mxu0 0
  %1356 = vmatpush1.bf16.msra.mxu0 0
  %1357 = vmatprep.subr.bf16.mxu0 0
  %1358 = vmatpush1.bf16.msra.mxu0 0
  %1359 = vmatprep.mubr.bf16.mxu0 0
  %1360 = vmatmul.mubr.bf16.gmra.mrb[0].mxu0 %v1325
  %v1361 = vpop.f32.mrb[0].mxu0
  %v1362 = vadd.f32 0.0, %v1361
  %v1363 = vpop.f32.mrb[0].mxu0
  %v1364 = vpop.f32.mrb[0].mxu0
  %v1365 = vpop.f32.mrb[0].mxu0
  %1366 = vdwg.mxu0
  %v1367 = vadd.f32 %v907, %v1362
  %v1368 = vxor.u32 %v1367, 2147483648
  %v1369 = vmul.f32 %v1368, 1.442695
  %v1370 = vpow.pop %v1369
  %v1371 = vadd.f32 %v1370, 1.0
  %v1372 = vrcp.pop %v1371
  %v1373 = vmul.f32 1.0, %v1372
  %v1374 = vtanh.pop %v1367
  %v1375 = vmul.f32 %v1373, %v1308
  %1377 = vrot.lane.b32.xlu0 %v1374, 32
  %v1378 = vpop.permute.xlu0 %1377
  %v1380 = vmul.f32 %v1373, %v1378
  %1382 = vrot.lane.b32.xlu0 %v1380, 32
  %v1383 = vpop.permute.xlu0 %1382
  %v1385 = vadd.f32 %v1375, %v1383
  %v1386 = vtanh.pop %v1385
  %1388 = vrot.lane.b32.xlu0 %v1386, 32
  %v1389 = vpop.permute.xlu0 %1388
  %v1391 = vmul.f32 %v1373, %v1389
  %1393 = vrot.lane.b32.xlu0 %v1391, 64
  %v1394 = vpop.permute.xlu0 %1393
  %1396 = vst.msk [vmem:[#allocation2 + $0x28] sm:$0xff] %vm179, %v1394
  %v1397 = vpack.c.bf16 %v1391, %v1391
  %1399 = vrot.lane.b32.xlu0 %v1397, 64
  %v1400 = vpop.permute.xlu0 %1399
  %v1402 = vsel %vm179, %v1400, 0
  %1404 = vmatprep.subr.bf16.mxu0 0
  %1405 = vmatpush1.bf16.msra.mxu0 %v931
  %1406 = vmatprep.subr.bf16.mxu0 0
  %1407 = vmatpush1.bf16.msra.mxu0 %v932
  %1408 = vmatprep.subr.bf16.mxu0 0
  %1409 = vmatpush1.bf16.msra.mxu0 0
  %1410 = vmatprep.subr.bf16.mxu0 0
  %1411 = vmatpush1.bf16.msra.mxu0 0
  %1412 = vmatprep.subr.bf16.mxu0 0
  %1413 = vmatpush1.bf16.msra.mxu0 0
  %1414 = vmatprep.subr.bf16.mxu0 0
  %1415 = vmatpush1.bf16.msra.mxu0 0
  %1416 = vmatprep.subr.bf16.mxu0 0
  %1417 = vmatpush1.bf16.msra.mxu0 0
  %1418 = vmatprep.subr.bf16.mxu0 0
  %1419 = vmatpush1.bf16.msra.mxu0 0
  %1420 = vmatprep.subr.bf16.mxu0 0
  %1421 = vmatpush1.bf16.msra.mxu0 0
  %1422 = vmatprep.subr.bf16.mxu0 0
  %1423 = vmatpush1.bf16.msra.mxu0 0
  %1424 = vmatprep.subr.bf16.mxu0 0
  %1425 = vmatpush1.bf16.msra.mxu0 0
  %1426 = vmatprep.subr.bf16.mxu0 0
  %1427 = vmatpush1.bf16.msra.mxu0 0
  %1428 = vmatprep.subr.bf16.mxu0 0
  %1429 = vmatpush1.bf16.msra.mxu0 0
  %1430 = vmatprep.subr.bf16.mxu0 0
  %1431 = vmatpush1.bf16.msra.mxu0 0
  %1432 = vmatprep.subr.bf16.mxu0 0
  %1433 = vmatpush1.bf16.msra.mxu0 0
  %1434 = vmatprep.subr.bf16.mxu0 0
  %1435 = vmatpush1.bf16.msra.mxu0 0
  %1436 = vmatprep.mubr.bf16.mxu0 0
  %1437 = vmatmul.mubr.bf16.gmra.mrb[0].mxu0 %v1402
  %v1438 = vpop.f32.mrb[0].mxu0
  %v1439 = vadd.f32 0.0, %v1438
  %v1440 = vpop.f32.mrb[0].mxu0
  %v1441 = vpop.f32.mrb[0].mxu0
  %v1442 = vpop.f32.mrb[0].mxu0
  %1443 = vdwg.mxu0
  %v1444 = vadd.f32 %v912, %v1439
  %v1445 = vxor.u32 %v1444, 2147483648
  %v1446 = vmul.f32 %v1445, 1.442695
  %v1447 = vpow.pop %v1446
  %v1448 = vadd.f32 %v1447, 1.0
  %v1449 = vrcp.pop %v1448
  %v1450 = vmul.f32 1.0, %v1449
  %v1451 = vtanh.pop %v1444
  %v1452 = vmul.f32 %v1450, %v1385
  %1454 = vrot.lane.b32.xlu0 %v1451, 32
  %v1455 = vpop.permute.xlu0 %1454
  %v1457 = vmul.f32 %v1450, %v1455
  %1459 = vrot.lane.b32.xlu0 %v1457, 32
  %v1460 = vpop.permute.xlu0 %1459
  %v1462 = vadd.f32 %v1452, %v1460
  %v1463 = vtanh.pop %v1462
  %1465 = vrot.lane.b32.xlu0 %v1463, 32
  %v1466 = vpop.permute.xlu0 %1465
  %v1468 = vmul.f32 %v1450, %v1466
  %1470 = vrot.lane.b32.xlu0 %v1468, 64
  %v1471 = vpop.permute.xlu0 %1470
  %1473 = vst.msk [vmem:[#allocation2 + $0x30] sm:$0xff] %vm179, %v1471
  %v1474 = vpack.c.bf16 %v1468, %v1468
  %1476 = vrot.lane.b32.xlu0 %v1474, 64
  %v1477 = vpop.permute.xlu0 %1476
  %v1479 = vsel %vm179, %v1477, 0
  %1481 = vmatprep.subr.bf16.mxu0 0
  %1482 = vmatpush1.bf16.msra.mxu0 %v931
  %1483 = vmatprep.subr.bf16.mxu0 0
  %1484 = vmatpush1.bf16.msra.mxu0 %v932
  %1485 = vmatprep.subr.bf16.mxu0 0
  %1486 = vmatpush1.bf16.msra.mxu0 0
  %1487 = vmatprep.subr.bf16.mxu0 0
  %1488 = vmatpush1.bf16.msra.mxu0 0
  %1489 = vmatprep.subr.bf16.mxu0 0
  %1490 = vmatpush1.bf16.msra.mxu0 0
  %1491 = vmatprep.subr.bf16.mxu0 0
  %1492 = vmatpush1.bf16.msra.mxu0 0
  %1493 = vmatprep.subr.bf16.mxu0 0
  %1494 = vmatpush1.bf16.msra.mxu0 0
  %1495 = vmatprep.subr.bf16.mxu0 0
  %1496 = vmatpush1.bf16.msra.mxu0 0
  %1497 = vmatprep.subr.bf16.mxu0 0
  %1498 = vmatpush1.bf16.msra.mxu0 0
  %1499 = vmatprep.subr.bf16.mxu0 0
  %1500 = vmatpush1.bf16.msra.mxu0 0
  %1501 = vmatprep.subr.bf16.mxu0 0
  %1502 = vmatpush1.bf16.msra.mxu0 0
  %1503 = vmatprep.subr.bf16.mxu0 0
  %1504 = vmatpush1.bf16.msra.mxu0 0
  %1505 = vmatprep.subr.bf16.mxu0 0
  %1506 = vmatpush1.bf16.msra.mxu0 0
  %1507 = vmatprep.subr.bf16.mxu0 0
  %1508 = vmatpush1.bf16.msra.mxu0 0
  %1509 = vmatprep.subr.bf16.mxu0 0
  %1510 = vmatpush1.bf16.msra.mxu0 0
  %1511 = vmatprep.subr.bf16.mxu0 0
  %1512 = vmatpush1.bf16.msra.mxu0 0
  %1513 = vmatprep.mubr.bf16.mxu0 0
  %1514 = vmatmul.mubr.bf16.gmra.mrb[0].mxu0 %v1479
  %v1515 = vpop.f32.mrb[0].mxu0
  %v1516 = vadd.f32 0.0, %v1515
  %v1517 = vpop.f32.mrb[0].mxu0
  %v1518 = vpop.f32.mrb[0].mxu0
  %v1519 = vpop.f32.mrb[0].mxu0
  %1520 = vdwg.mxu0
  %v1521 = vadd.f32 %v915, %v1516
  %v1522 = vxor.u32 %v1521, 2147483648
  %v1523 = vmul.f32 %v1522, 1.442695
  %v1524 = vpow.pop %v1523
  %v1525 = vadd.f32 %v1524, 1.0
  %v1526 = vrcp.pop %v1525
  %v1527 = vmul.f32 1.0, %v1526
  %v1528 = vtanh.pop %v1521
  %v1529 = vmul.f32 %v1527, %v1462
  %1531 = vrot.lane.b32.xlu0 %v1528, 32
  %v1532 = vpop.permute.xlu0 %1531
  %v1534 = vmul.f32 %v1527, %v1532
  %1536 = vrot.lane.b32.xlu0 %v1534, 32
  %v1537 = vpop.permute.xlu0 %1536
  %v1539 = vadd.f32 %v1529, %v1537
  %v1540 = vtanh.pop %v1539
  %1542 = vrot.lane.b32.xlu0 %v1540, 32
  %v1543 = vpop.permute.xlu0 %1542
  %v1545 = vmul.f32 %v1527, %v1543
  %1547 = vrot.lane.b32.xlu0 %v1545, 64
  %v1548 = vpop.permute.xlu0 %1547
  %1550 = vst.msk [vmem:[#allocation2 + $0x38] sm:$0xff] %vm179, %v1548
  %s1551 = scalar_lea.vmem %s12, 8
  %1552 = vst.msk [vmem:[%s1551] sm:$0xff] %vm179, %v1548
  %1554 = vrot.lane.b32.xlu0 %v1539, 96
  %v1555 = vpop.permute.xlu0 %1554
  %s1557 = scalar_lea.vmem %s13, 8
  %1558 = vst.msk [vmem:[%s1557] sm:$0xff] %vm179, %v1555
  %v1559 = vld [vmem:[#allocation2] sm:$0xff]
  %v1560 = vld [vmem:[#allocation2 + $0x8] sm:$0xff]
  %v1561 = vld [vmem:[#allocation2 + $0x10] sm:$0xff]
  %v1562 = vld [vmem:[#allocation2 + $0x18] sm:$0xff]
  %v1563 = vld [vmem:[#allocation2 + $0x20] sm:$0xff]
  %v1564 = vld [vmem:[#allocation2 + $0x28] sm:$0xff]
  %v1565 = vld [vmem:[#allocation2 + $0x30] sm:$0xff]
  %v1566 = vld [vmem:[#allocation2 + $0x38] sm:$0xff]
  %v1567 = vpack.c.bf16 %v1560, %v1559
  %v1568 = vpack.c.bf16 %v1562, %v1561
  %v1569 = vpack.c.bf16 %v1564, %v1563
  %v1570 = vpack.c.bf16 %v1566, %v1565
  %v1571 = vld [vmem:[%s9] sm:$0xf]
  %v1572 = vld [vmem:[%s9 + $0x4] sm:$0xf]
  %v1573 = vld [vmem:[%s9 + $0x8] sm:$0xf]
  %v1574 = vld [vmem:[%s9 + $0xc] sm:$0xf]
  %v1575 = vld [vmem:[%s10] sm:$0x1]
  %v1577 = vlaneseq
  %v1578 = vshrl.u32 %v1577, 7
  %v1579 = vsub.s32 0, %v1578
  %v1580 = vrot.slane %v1575, %v1579
  %v1586 = vunpack.c.l.b16 %v1571
  %v1587 = vunpack.c.l.b16 %v1572
  %v1588 = vunpack.c.l.b16 %v1573
  %v1589 = vunpack.c.l.b16 %v1574
  %v1590 = vpack.c.b16 %v1587, %v1586
  %v1591 = vpack.c.b16 %v1589, %v1588
  %v1595 = vsel %vm179, %v1567, 0
  %v1598 = vsel %vm179, %v1568, 0
  %v1601 = vsel %vm179, %v1569, 0
  %v1604 = vsel %vm179, %v1570, 0
  %1606 = vmatprep.subr.bf16.mxu0 0
  %1607 = vmatpush1.bf16.msra.mxu0 %v1590
  %1608 = vmatprep.subr.bf16.mxu0 0
  %1609 = vmatpush1.bf16.msra.mxu0 %v1591
  %1610 = vmatprep.subr.bf16.mxu0 0
  %1611 = vmatpush1.bf16.msra.mxu0 0
  %1612 = vmatprep.subr.bf16.mxu0 0
  %1613 = vmatpush1.bf16.msra.mxu0 0
  %1614 = vmatprep.subr.bf16.mxu0 0
  %1615 = vmatpush1.bf16.msra.mxu0 0
  %1616 = vmatprep.subr.bf16.mxu0 0
  %1617 = vmatpush1.bf16.msra.mxu0 0
  %1618 = vmatprep.subr.bf16.mxu0 0
  %1619 = vmatpush1.bf16.msra.mxu0 0
  %1620 = vmatprep.subr.bf16.mxu0 0
  %1621 = vmatpush1.bf16.msra.mxu0 0
  %1622 = vmatprep.subr.bf16.mxu0 0
  %1623 = vmatpush1.bf16.msra.mxu0 0
  %1624 = vmatprep.subr.bf16.mxu0 0
  %1625 = vmatpush1.bf16.msra.mxu0 0
  %1626 = vmatprep.subr.bf16.mxu0 0
  %1627 = vmatpush1.bf16.msra.mxu0 0
  %1628 = vmatprep.subr.bf16.mxu0 0
  %1629 = vmatpush1.bf16.msra.mxu0 0
  %1630 = vmatprep.subr.bf16.mxu0 0
  %1631 = vmatpush1.bf16.msra.mxu0 0
  %1632 = vmatprep.subr.bf16.mxu0 0
  %1633 = vmatpush1.bf16.msra.mxu0 0
  %1634 = vmatprep.subr.bf16.mxu0 0
  %1635 = vmatpush1.bf16.msra.mxu0 0
  %1636 = vmatprep.subr.bf16.mxu0 0
  %1637 = vmatpush1.bf16.msra.mxu0 0
  %1638 = vmatprep.mubr.bf16.mxu0 0
  %1639 = vmatmul.mubr.bf16.gmra.mrb[0].mxu0 %v1595
  %v1640 = vpop.f32.mrb[0].mxu0
  %v1641 = vadd.f32 %v1580, %v1640
  %v1642 = vpop.f32.mrb[0].mxu0
  %v1643 = vpop.f32.mrb[0].mxu0
  %v1644 = vadd.f32 %v1580, %v1643
  %v1645 = vpop.f32.mrb[0].mxu0
  %1646 = vmatprep.mubr.bf16.mxu0 0
  %1647 = vmatmul.mubr.bf16.gmra.mrb[0].mxu0 %v1598
  %v1648 = vpop.f32.mrb[0].mxu0
  %v1649 = vadd.f32 %v1580, %v1648
  %v1650 = vpop.f32.mrb[0].mxu0
  %v1651 = vpop.f32.mrb[0].mxu0
  %v1652 = vadd.f32 %v1580, %v1651
  %v1653 = vpop.f32.mrb[0].mxu0
  %1654 = vmatprep.mubr.bf16.mxu0 0
  %1655 = vmatmul.mubr.bf16.gmra.mrb[0].mxu0 %v1601
  %v1656 = vpop.f32.mrb[0].mxu0
  %v1657 = vadd.f32 %v1580, %v1656
  %v1658 = vpop.f32.mrb[0].mxu0
  %v1659 = vpop.f32.mrb[0].mxu0
  %v1660 = vadd.f32 %v1580, %v1659
  %v1661 = vpop.f32.mrb[0].mxu0
  %1662 = vmatprep.mubr.bf16.mxu0 0
  %1663 = vmatmul.mubr.bf16.gmra.mrb[0].mxu0 %v1604
  %v1664 = vpop.f32.mrb[0].mxu0
  %v1665 = vadd.f32 %v1580, %v1664
  %v1666 = vpop.f32.mrb[0].mxu0
  %v1667 = vpop.f32.mrb[0].mxu0
  %v1668 = vadd.f32 %v1580, %v1667
  %v1669 = vpop.f32.mrb[0].mxu0
  %1670 = vdwg.mxu0
  %1671 = vst [vmem:[%s11] sm:$0xff] %v1641
  %1672 = vst [vmem:[%s11 + $0x8] sm:$0xff] %v1644
  %1673 = vst [vmem:[%s11 + $0x10] sm:$0xff] %v1649
  %1674 = vst [vmem:[%s11 + $0x18] sm:$0xff] %v1652
  %1675 = vst [vmem:[%s11 + $0x20] sm:$0xff] %v1657
  %1676 = vst [vmem:[%s11 + $0x28] sm:$0xff] %v1660
  %1677 = vst [vmem:[%s11 + $0x30] sm:$0xff] %v1665
  %1678 = vst [vmem:[%s11 + $0x38] sm:$0xff] %v1668
  // Predicated region
  $region46: #{lstm_decoder_forward.1} parent=0 // pred_check
    _
  $region47: #{lstm_decoder_forward.1} parent=0 // pred_check_branch
    %1680 = sbr.rel (0) target = $region49
  $region48: #{lstm_decoder_forward.1} parent=0 // pred_region
    _
  $region49: #{lstm_decoder_forward.1} parent=0 // pred_fallthru
    _
  // Predicated region
  $region50: #{lstm_decoder_forward.1} parent=0 // pred_check
    _
  $region51: #{lstm_decoder_forward.1} parent=0 // pred_check_branch
    %1682 = sbr.rel (0) target = $region53
  $region52: #{lstm_decoder_forward.1} parent=0 // pred_region
    _
  $region53: #{lstm_decoder_forward.1} parent=0 // pred_fallthru
    _
  // Predicated region
  $region54: #{lstm_decoder_forward.1} parent=0 // pred_check
    _
  $region55: #{lstm_decoder_forward.1} parent=0 // pred_check_branch
    %1684 = sbr.rel (0) target = $region57
  $region56: #{lstm_decoder_forward.1} parent=0 // pred_region
    _
  $region57: #{lstm_decoder_forward.1} parent=0 // pred_fallthru
    _
  // Predicated region
  $region58: #{lstm_decoder_forward.1} parent=0 // pred_check
    _
  $region59: #{lstm_decoder_forward.1} parent=0 // pred_check_branch
    %1686 = sbr.rel (0) target = $region61
  $region60: #{lstm_decoder_forward.1} parent=0 // pred_region
    _
  $region61: #{lstm_decoder_forward.1} parent=0 // pred_fallthru
    _
  // Predicated region
  $region62: #{lstm_decoder_forward.1} parent=0 // pred_check
    _
  $region63: #{lstm_decoder_forward.1} parent=0 // pred_check_branch
    %1688 = sbr.rel (0) target = $region65
  $region64: #{lstm_decoder_forward.1} parent=0 // pred_region
    _
  $region65: #{lstm_decoder_forward.1} parent=0 // pred_fallthru
    _
  // Predicated region
  $region66: #{lstm_decoder_forward.1} parent=0 // pred_check
    _
  $region67: #{lstm_decoder_forward.1} parent=0 // pred_check_branch
    %1690 = sbr.rel (0) target = $region69
  $region68: #{lstm_decoder_forward.1} parent=0 // pred_region
    _
  $region69: #{lstm_decoder_forward.1} parent=0 // pred_fallthru
    _

</llo_original>
